<compile_context>
chip_gen: v7x
topology: tpu7x:2x2x1
jax: 0.10.0
libtpu: 0.0.40
codegen_flags: <defaults>
</compile_context>

<pallas_src>
import math
import functools

import numpy as np
import jax
import jax.numpy as jnp
from jax.experimental import pallas as pl
from jax.experimental.pallas import tpu as pltpu

IN_DIM = 16
HIDDEN_DIM = 32
NUM_LAYERS = 2
HEADS = 4
GROUPS = 2
DROP_PROB = 0.0      # inference: dropout is identity
BN_EPS = 1e-5


# ----------------------------- Pallas kernel ------------------------------- #

def _fused_forward_kernel(x_ref, a_ref, pw_ref, w_ref, vec_ref, out_ref, *,
                          heads, num_layers, n):
    """Entire forward in one gridless kernel.

    x_ref   [N, IN]
    a_ref   [N, N]        GCN-normalized adjacency, A[target, source]
    pw_ref  [IN, C]       pre_lin weight
    w_ref   [3*L, C, C]   per layer: block-diagonal (Wq, Wk, Wv)
    vec_ref [1+5*L, C]    pre_b, then per layer (bq, bk, bv, bn_scale, bn_shift)
    out_ref [L, N, C]     intermediate representation after each layer
    """
    c = pw_ref.shape[1]
    dh = c // heads
    inv_sqrt_dh = 1.0 / math.sqrt(dh)

    a = a_ref[...]                                   # [N, N], loaded once

    # pre_lin + ReLU (pre_drop is identity in inference)
    h0 = jnp.dot(x_ref[...], pw_ref[...], preferred_element_type=jnp.float32)
    h0 = jnp.maximum(h0 + vec_ref[0:1, :], 0.0)

    # Register-resident, growing representation stack: rows [l*N:(l+1)*N] hold
    # the layer-l representation of all nodes.
    reps = h0                                        # [N, C]

    for li in range(num_layers):                     # static unroll
        L = li + 1                                   # number of reps available
        wq = w_ref[3 * li + 0]                       # [C, C] block-diagonal
        wk = w_ref[3 * li + 1]
        wv = w_ref[3 * li + 2]
        vb = 1 + 5 * li
        bq = vec_ref[vb + 0:vb + 1, :]
        bk = vec_ref[vb + 1:vb + 2, :]
        bv = vec_ref[vb + 2:vb + 3, :]
        bn_scale = vec_ref[vb + 3:vb + 4, :]
        bn_shift = vec_ref[vb + 4:vb + 5, :]

        h_last = reps[(L - 1) * n:L * n, :]          # [N, C], latest rep

        # Grouped linears as plain MXU matmuls (block-diagonal weights);
        # 1/sqrt(Dh) folded into Q once per layer.
        q = (jnp.dot(h_last, wq, preferred_element_type=jnp.float32) + bq) * inv_sqrt_dh
        k = jnp.dot(reps, wk, preferred_element_type=jnp.float32) + bk      # [L*N, C]
        v = jnp.dot(reps, wv, preferred_element_type=jnp.float32) + bv      # [L*N, C]

        head_slabs = []
        for h in range(heads):                       # static unroll (heads small)
            c0 = h * dh
            q_h = q[:, c0:c0 + dh]                   # [N, Dh]
            k_h = k[:, c0:c0 + dh]                   # [L*N, Dh]
            v_h = v[:, c0:c0 + dh]                   # [L*N, Dh]

            # Scores for ALL L layer slots of this head in one MXU push: [N, L*N]
            s = jax.lax.dot_general(q_h, k_h, (((1,), (1,)), ((), ())),
                                    preferred_element_type=jnp.float32)

            slabs = [s[:, l * n:(l + 1) * n] for l in range(L)]   # L x [N, N]
            m = slabs[0]
            for l in range(1, L):
                m = jnp.maximum(m, slabs[l])
            # restricted_softmax (PyG DNAConv, margin=0): clamp max at 0 and
            # include exp(-max) in the denominator.
            m = jnp.maximum(m, 0.0)
            exps = [jnp.exp(sl - m) for sl in slabs]
            denom = jnp.exp(-m)
            for e in exps:
                denom = denom + e

            # adjacency / denom hoisted out of the per-slot aggregation loop
            aw = a / denom                            # [N, N], exact divide

            # out_h[i] = sum_j A[i,j] * sum_l P_l[i,j] * V_l[j]
            acc = jnp.dot(exps[0] * aw, v_h[0:n, :],
                          preferred_element_type=jnp.float32)
            for l in range(1, L):
                acc = acc + jnp.dot(exps[l] * aw, v_h[l * n:(l + 1) * n, :],
                                    preferred_element_type=jnp.float32)
            head_slabs.append(acc)

        # Full-width [N, C] layer output built in registers; ReLU + BN(eval)
        # affine; ONE unmasked lane-dense store per layer.
        layer_out = jnp.concatenate(head_slabs, axis=1)
        layer_out = jnp.maximum(layer_out, 0.0) * bn_scale + bn_shift
        out_ref[li] = layer_out
        reps = jnp.concatenate([reps, layer_out], axis=0)          # [(L+1)*N, C]


# ------------------------------ JAX glue ----------------------------------- #

def block_diag_weight(w):
    # grouped Linear weight [G, Cg, Cg] -> block-diagonal [C, C] (in x out)
    g, cg, _ = w.shape
    cdim = g * cg
    wbd = jnp.zeros((cdim, cdim), jnp.float32)
    for i in range(g):
        wbd = wbd.at[i * cg:(i + 1) * cg, i * cg:(i + 1) * cg].set(w[i])
    return wbd


def build_norm_adj(edge_indices, num_nodes):
    # gcn_norm with add_self_loops=True; A[target, source].
    src = edge_indices[0]
    dst = edge_indices[1]
    a = jnp.zeros((num_nodes, num_nodes), jnp.float32).at[dst, src].add(1.0)
    # add_remaining_self_loops: weight-1 self-loop only where one is missing.
    diag = jnp.diagonal(a)
    a = a + jnp.diag(jnp.where(diag == 0.0, 1.0, 0.0))
    deg = a.sum(axis=1)
    dinv = jnp.where(deg > 0, jax.lax.rsqrt(deg), 0.0)
    return a * dinv[:, None] * dinv[None, :]


def dna_node_rep_forward(x, edge_indices, params, *, heads):
    n = x.shape[0]
    c = params['pre_w'].shape[1]
    num_layers = len(params['layers'])
    a_norm = build_norm_adj(edge_indices, n)

    # Pack all tiny parameters into two tensors -> few DMAs instead of ~20.
    w_list = []
    vec_list = [params['pre_b'].reshape(1, c)]
    for lp in params['layers']:
        scale = lp['bn_gamma'] / jnp.sqrt(lp['bn_var'] + BN_EPS)
        shift = lp['bn_beta'] - lp['bn_mean'] * scale
        w_list += [block_diag_weight(lp['wq']),
                   block_diag_weight(lp['wk']),
                   block_diag_weight(lp['wv'])]
        vec_list += [lp['bq'].reshape(1, c), lp['bk'].reshape(1, c),
                     lp['bv'].reshape(1, c), scale.reshape(1, c),
                     shift.reshape(1, c)]
    w_all = jnp.stack(w_list, axis=0)                  # [3*L, C, C]
    vec_all = jnp.concatenate(vec_list, axis=0)        # [1+5*L, C]

    kernel = functools.partial(_fused_forward_kernel, heads=heads,
                               num_layers=num_layers, n=n)
    out = pl.pallas_call(
        kernel,
        out_shape=jax.ShapeDtypeStruct((num_layers, n, c), jnp.float32),
        in_specs=[pl.BlockSpec(memory_space=pltpu.MemorySpace.VMEM)] * 5,
        out_specs=pl.BlockSpec(memory_space=pltpu.MemorySpace.VMEM),
    )(x, a_norm, params['pre_w'], w_all, vec_all)
    return [out[i] for i in range(num_layers)]


# --------------------------- pure-JAX reference ----------------------------- #

def grouped_linear(x, w, b):
    # PyG grouped Linear: x [B, C], w [G, C/G, C/G], b [C]
    bdim, c = x.shape
    g = w.shape[0]
    xg = x.reshape(bdim, g, c // g)
    out = jnp.einsum('bgi,gio->bgo', xg, w, precision='highest').reshape(bdim, c)
    return out + b


def reference_forward(x, edge_indices, params, *, heads):
    n = x.shape[0]
    a = build_norm_adj(edge_indices, n)
    h = jax.nn.relu(jnp.dot(x, params['pre_w'], precision='highest')
                    + params['pre_b'])
    h_stack = h[:, None, :]
    reps = []
    for lp in params['layers']:
        num_reps, c = h_stack.shape[1], h_stack.shape[2]
        dh = c // heads
        q = grouped_linear(h_stack[:, -1, :], lp['wq'], lp['bq']).reshape(n, heads, dh)
        k = grouped_linear(h_stack.reshape(n * num_reps, c), lp['wk'], lp['bk']
                           ).reshape(n, num_reps, heads, dh)
        v = grouped_linear(h_stack.reshape(n * num_reps, c), lp['wv'], lp['bv']
                           ).reshape(n, num_reps, heads, dh)
        s = jnp.einsum('ihd,jlhd->ijhl', q, k, precision='highest') / math.sqrt(dh)
        # restricted_softmax over the layer axis (PyG DNAConv, margin=0)
        s_max = jnp.maximum(s.max(axis=-1, keepdims=True), 0.0)
        e = jnp.exp(s - s_max)
        p = e / (e.sum(axis=-1, keepdims=True) + jnp.exp(-s_max))
        o = jnp.einsum('ijhl,jlhd->ijhd', p, v, precision='highest')
        agg = jnp.einsum('ij,ijhd->ihd', a, o, precision='highest').reshape(n, c)
        out = jax.nn.relu(agg)
        scale = lp['bn_gamma'] / jnp.sqrt(lp['bn_var'] + BN_EPS)
        shift = lp['bn_beta'] - lp['bn_mean'] * scale
        out = out * scale + shift
        reps.append(out)
        h_stack = jnp.concatenate([h_stack, out[:, None, :]], axis=1)
    return reps


# ------------------------------ parameters ---------------------------------- #

def init_params(key, in_dim, hidden, num_layers, groups):
    keys = jax.random.split(key, 2 + num_layers)
    params = {
        'pre_w': 0.2 * jax.random.normal(keys[0], (in_dim, hidden), jnp.float32),
        'pre_b': 0.1 * jax.random.normal(keys[1], (hidden,), jnp.float32),
        'layers': [],
    }
    cg = hidden // groups
    for li in range(num_layers):
        lk = jax.random.split(keys[2 + li], 10)
        params['layers'].append({
            'wq': 0.3 * jax.random.normal(lk[0], (groups, cg, cg), jnp.float32),
            'bq': 0.05 * jax.random.normal(lk[1], (hidden,), jnp.float32),
            'wk': 0.3 * jax.random.normal(lk[2], (groups, cg, cg), jnp.float32),
            'bk': 0.05 * jax.random.normal(lk[3], (hidden,), jnp.float32),
            'wv': 0.3 * jax.random.normal(lk[4], (groups, cg, cg), jnp.float32),
            'bv': 0.05 * jax.random.normal(lk[5], (hidden,), jnp.float32),
            'bn_gamma': 1.0 + 0.1 * jax.random.normal(lk[6], (hidden,), jnp.float32),
            'bn_beta': 0.05 * jax.random.normal(lk[7], (hidden,), jnp.float32),
            'bn_mean': 0.1 * jax.random.normal(lk[8], (hidden,), jnp.float32),
            'bn_var': 0.5 + 0.5 * jax.random.uniform(lk[9], (hidden,), jnp.float32),
        })
    return params


if __name__ == "__main__":
    key = jax.random.PRNGKey(0)
    kx, kp = jax.random.split(key)

    n_nodes = 8
    x = jax.random.normal(kx, (n_nodes, IN_DIM), jnp.float32)

    # small ring graph, both directions (edge_index[0]=source, [1]=target)
    src = np.arange(n_nodes)
    dst = (src + 1) % n_nodes
    edge_indices = jnp.asarray(
        np.stack([np.concatenate([src, dst]), np.concatenate([dst, src])]),
        dtype=jnp.int32)

    params = init_params(kp, IN_DIM, HIDDEN_DIM, NUM_LAYERS, GROUPS)

    reps = dna_node_rep_forward(x, edge_indices, params, heads=HEADS)
    reps = jax.block_until_ready(reps)

    refs = reference_forward(x, edge_indices, params, heads=HEADS)
    # Exact divide in the kernel (no approx reciprocal) -> only f32 rounding
    # differences remain between the fused kernel and the f32 reference.
    for r, rr in zip(reps, refs):
        np.testing.assert_allclose(np.asarray(r), np.asarray(rr),
                                   rtol=1e-4, atol=1e-4)

    print("KERNEL_OK")
</pallas_src>

<mosaic_0001>
module attributes {stable_mosaic.version = 11 : i64} {
  func.func @_fused_forward_kernel(%arg0: memref<8x16xf32, #tpu.memory_space<vmem>>, %arg1: memref<8x8xf32, #tpu.memory_space<vmem>>, %arg2: memref<16x32xf32, #tpu.memory_space<vmem>>, %arg3: memref<6x32x32xf32, #tpu.memory_space<vmem>>, %arg4: memref<11x32xf32, #tpu.memory_space<vmem>>, %arg5: memref<2x8x32xf32, #tpu.memory_space<vmem>>) attributes {dimension_semantics = [], scalar_prefetch = 0 : i64, scratch_operands = 0 : i64, tpu.core_type = #tpu.core_type<tc>} {
    %c0 = arith.constant 0 : index
    %c0_0 = arith.constant 0 : index
    %0 = vector.load %arg1[%c0, %c0_0] : memref<8x8xf32, #tpu.memory_space<vmem>>, vector<8x8xf32>
    %c0_1 = arith.constant 0 : index
    %c0_2 = arith.constant 0 : index
    %1 = vector.load %arg0[%c0_1, %c0_2] : memref<8x16xf32, #tpu.memory_space<vmem>>, vector<8x16xf32>
    %c0_3 = arith.constant 0 : index
    %c0_4 = arith.constant 0 : index
    %2 = vector.load %arg2[%c0_3, %c0_4] : memref<16x32xf32, #tpu.memory_space<vmem>>, vector<16x32xf32>
    %cst = arith.constant dense<0.000000e+00> : vector<8x32xf32>
    %3 = tpu.matmul %1, %2, %cst {dimension_numbers = #tpu.dot_dimension_numbers<[1], [0], [0], [1], [0, 0, 1, 1], [], []>} : vector<8x16xf32>, vector<16x32xf32>, vector<8x32xf32> -> vector<8x32xf32>
    %c0_5 = arith.constant 0 : index
    %c0_6 = arith.constant 0 : index
    %4 = vector.load %arg4[%c0_5, %c0_6] : memref<11x32xf32, #tpu.memory_space<vmem>>, vector<1x32xf32>
    %5 = vector.broadcast %4 : vector<1x32xf32> to vector<8x32xf32>
    %6 = arith.addf %3, %5 : vector<8x32xf32>
    %cst_7 = arith.constant 0.000000e+00 : f32
    %7 = vector.broadcast %cst_7 : f32 to vector<8x32xf32>
    %8 = arith.maximumf %6, %7 : vector<8x32xf32>
    %c0_8 = arith.constant 0 : index
    %c0_9 = arith.constant 0 : index
    %c0_10 = arith.constant 0 : index
    %9 = vector.load %arg3[%c0_8, %c0_9, %c0_10] : memref<6x32x32xf32, #tpu.memory_space<vmem>>, vector<1x32x32xf32>
    %10 = vector.shape_cast %9 : vector<1x32x32xf32> to vector<32x32xf32>
    %c1 = arith.constant 1 : index
    %c0_11 = arith.constant 0 : index
    %c0_12 = arith.constant 0 : index
    %11 = vector.load %arg3[%c1, %c0_11, %c0_12] : memref<6x32x32xf32, #tpu.memory_space<vmem>>, vector<1x32x32xf32>
    %12 = vector.shape_cast %11 : vector<1x32x32xf32> to vector<32x32xf32>
    %c2 = arith.constant 2 : index
    %c0_13 = arith.constant 0 : index
    %c0_14 = arith.constant 0 : index
    %13 = vector.load %arg3[%c2, %c0_13, %c0_14] : memref<6x32x32xf32, #tpu.memory_space<vmem>>, vector<1x32x32xf32>
    %14 = vector.shape_cast %13 : vector<1x32x32xf32> to vector<32x32xf32>
    %c1_15 = arith.constant 1 : index
    %c0_16 = arith.constant 0 : index
    %15 = vector.load %arg4[%c1_15, %c0_16] : memref<11x32xf32, #tpu.memory_space<vmem>>, vector<1x32xf32>
    %c2_17 = arith.constant 2 : index
    %c0_18 = arith.constant 0 : index
    %16 = vector.load %arg4[%c2_17, %c0_18] : memref<11x32xf32, #tpu.memory_space<vmem>>, vector<1x32xf32>
    %c3 = arith.constant 3 : index
    %c0_19 = arith.constant 0 : index
    %17 = vector.load %arg4[%c3, %c0_19] : memref<11x32xf32, #tpu.memory_space<vmem>>, vector<1x32xf32>
    %c4 = arith.constant 4 : index
    %c0_20 = arith.constant 0 : index
    %18 = vector.load %arg4[%c4, %c0_20] : memref<11x32xf32, #tpu.memory_space<vmem>>, vector<1x32xf32>
    %c5 = arith.constant 5 : index
    %c0_21 = arith.constant 0 : index
    %19 = vector.load %arg4[%c5, %c0_21] : memref<11x32xf32, #tpu.memory_space<vmem>>, vector<1x32xf32>
    %cst_22 = arith.constant dense<0.000000e+00> : vector<8x32xf32>
    %20 = tpu.matmul %8, %10, %cst_22 {dimension_numbers = #tpu.dot_dimension_numbers<[1], [0], [0], [1], [0, 0, 1, 1], [], []>} : vector<8x32xf32>, vector<32x32xf32>, vector<8x32xf32> -> vector<8x32xf32>
    %21 = vector.broadcast %15 : vector<1x32xf32> to vector<8x32xf32>
    %22 = arith.addf %20, %21 : vector<8x32xf32>
    %cst_23 = arith.constant 0.353553385 : f32
    %23 = vector.broadcast %cst_23 : f32 to vector<8x32xf32>
    %24 = arith.mulf %22, %23 : vector<8x32xf32>
    %cst_24 = arith.constant dense<0.000000e+00> : vector<8x32xf32>
    %25 = tpu.matmul %8, %12, %cst_24 {dimension_numbers = #tpu.dot_dimension_numbers<[1], [0], [0], [1], [0, 0, 1, 1], [], []>} : vector<8x32xf32>, vector<32x32xf32>, vector<8x32xf32> -> vector<8x32xf32>
    %26 = vector.broadcast %16 : vector<1x32xf32> to vector<8x32xf32>
    %27 = arith.addf %25, %26 : vector<8x32xf32>
    %cst_25 = arith.constant dense<0.000000e+00> : vector<8x32xf32>
    %28 = tpu.matmul %8, %14, %cst_25 {dimension_numbers = #tpu.dot_dimension_numbers<[1], [0], [0], [1], [0, 0, 1, 1], [], []>} : vector<8x32xf32>, vector<32x32xf32>, vector<8x32xf32> -> vector<8x32xf32>
    %29 = vector.broadcast %17 : vector<1x32xf32> to vector<8x32xf32>
    %30 = arith.addf %28, %29 : vector<8x32xf32>
    %31 = vector.extract_strided_slice %24 {offsets = [0, 0], sizes = [8, 8], strides = [1, 1]} : vector<8x32xf32> to vector<8x8xf32>
    %32 = vector.extract_strided_slice %27 {offsets = [0, 0], sizes = [8, 8], strides = [1, 1]} : vector<8x32xf32> to vector<8x8xf32>
    %33 = vector.extract_strided_slice %30 {offsets = [0, 0], sizes = [8, 8], strides = [1, 1]} : vector<8x32xf32> to vector<8x8xf32>
    %cst_26 = arith.constant dense<0.000000e+00> : vector<8x8xf32>
    %34 = tpu.matmul %31, %32, %cst_26 {dimension_numbers = #tpu.dot_dimension_numbers<[1], [1], [0], [0], [0, 0, 1, 0], [], []>} : vector<8x8xf32>, vector<8x8xf32>, vector<8x8xf32> -> vector<8x8xf32>
    %cst_27 = arith.constant 0.000000e+00 : f32
    %35 = vector.broadcast %cst_27 : f32 to vector<8x8xf32>
    %36 = arith.maximumf %34, %35 : vector<8x8xf32>
    %37 = arith.subf %34, %36 : vector<8x8xf32>
    %38 = math.exp %37 : vector<8x8xf32>
    %cst_28 = arith.constant 0.000000e+00 : f32
    %39 = vector.broadcast %cst_28 : f32 to vector<8x8xf32>
    %40 = arith.subf %39, %36 : vector<8x8xf32>
    %41 = math.exp %40 : vector<8x8xf32>
    %42 = arith.addf %41, %38 : vector<8x8xf32>
    %43 = arith.divf %0, %42 : vector<8x8xf32>
    %44 = arith.mulf %38, %43 : vector<8x8xf32>
    %cst_29 = arith.constant dense<0.000000e+00> : vector<8x8xf32>
    %45 = tpu.matmul %44, %33, %cst_29 {dimension_numbers = #tpu.dot_dimension_numbers<[1], [0], [0], [1], [0, 0, 1, 1], [], []>} : vector<8x8xf32>, vector<8x8xf32>, vector<8x8xf32> -> vector<8x8xf32>
    %46 = vector.extract_strided_slice %24 {offsets = [0, 8], sizes = [8, 8], strides = [1, 1]} : vector<8x32xf32> to vector<8x8xf32>
    %47 = vector.extract_strided_slice %27 {offsets = [0, 8], sizes = [8, 8], strides = [1, 1]} : vector<8x32xf32> to vector<8x8xf32>
    %48 = vector.extract_strided_slice %30 {offsets = [0, 8], sizes = [8, 8], strides = [1, 1]} : vector<8x32xf32> to vector<8x8xf32>
    %cst_30 = arith.constant dense<0.000000e+00> : vector<8x8xf32>
    %49 = tpu.matmul %46, %47, %cst_30 {dimension_numbers = #tpu.dot_dimension_numbers<[1], [1], [0], [0], [0, 0, 1, 0], [], []>} : vector<8x8xf32>, vector<8x8xf32>, vector<8x8xf32> -> vector<8x8xf32>
    %cst_31 = arith.constant 0.000000e+00 : f32
    %50 = vector.broadcast %cst_31 : f32 to vector<8x8xf32>
    %51 = arith.maximumf %49, %50 : vector<8x8xf32>
    %52 = arith.subf %49, %51 : vector<8x8xf32>
    %53 = math.exp %52 : vector<8x8xf32>
    %cst_32 = arith.constant 0.000000e+00 : f32
    %54 = vector.broadcast %cst_32 : f32 to vector<8x8xf32>
    %55 = arith.subf %54, %51 : vector<8x8xf32>
    %56 = math.exp %55 : vector<8x8xf32>
    %57 = arith.addf %56, %53 : vector<8x8xf32>
    %58 = arith.divf %0, %57 : vector<8x8xf32>
    %59 = arith.mulf %53, %58 : vector<8x8xf32>
    %cst_33 = arith.constant dense<0.000000e+00> : vector<8x8xf32>
    %60 = tpu.matmul %59, %48, %cst_33 {dimension_numbers = #tpu.dot_dimension_numbers<[1], [0], [0], [1], [0, 0, 1, 1], [], []>} : vector<8x8xf32>, vector<8x8xf32>, vector<8x8xf32> -> vector<8x8xf32>
    %61 = vector.extract_strided_slice %24 {offsets = [0, 16], sizes = [8, 8], strides = [1, 1]} : vector<8x32xf32> to vector<8x8xf32>
    %62 = vector.extract_strided_slice %27 {offsets = [0, 16], sizes = [8, 8], strides = [1, 1]} : vector<8x32xf32> to vector<8x8xf32>
    %63 = vector.extract_strided_slice %30 {offsets = [0, 16], sizes = [8, 8], strides = [1, 1]} : vector<8x32xf32> to vector<8x8xf32>
    %cst_34 = arith.constant dense<0.000000e+00> : vector<8x8xf32>
    %64 = tpu.matmul %61, %62, %cst_34 {dimension_numbers = #tpu.dot_dimension_numbers<[1], [1], [0], [0], [0, 0, 1, 0], [], []>} : vector<8x8xf32>, vector<8x8xf32>, vector<8x8xf32> -> vector<8x8xf32>
    %cst_35 = arith.constant 0.000000e+00 : f32
    %65 = vector.broadcast %cst_35 : f32 to vector<8x8xf32>
    %66 = arith.maximumf %64, %65 : vector<8x8xf32>
    %67 = arith.subf %64, %66 : vector<8x8xf32>
    %68 = math.exp %67 : vector<8x8xf32>
    %cst_36 = arith.constant 0.000000e+00 : f32
    %69 = vector.broadcast %cst_36 : f32 to vector<8x8xf32>
    %70 = arith.subf %69, %66 : vector<8x8xf32>
    %71 = math.exp %70 : vector<8x8xf32>
    %72 = arith.addf %71, %68 : vector<8x8xf32>
    %73 = arith.divf %0, %72 : vector<8x8xf32>
    %74 = arith.mulf %68, %73 : vector<8x8xf32>
    %cst_37 = arith.constant dense<0.000000e+00> : vector<8x8xf32>
    %75 = tpu.matmul %74, %63, %cst_37 {dimension_numbers = #tpu.dot_dimension_numbers<[1], [0], [0], [1], [0, 0, 1, 1], [], []>} : vector<8x8xf32>, vector<8x8xf32>, vector<8x8xf32> -> vector<8x8xf32>
    %76 = vector.extract_strided_slice %24 {offsets = [0, 24], sizes = [8, 8], strides = [1, 1]} : vector<8x32xf32> to vector<8x8xf32>
    %77 = vector.extract_strided_slice %27 {offsets = [0, 24], sizes = [8, 8], strides = [1, 1]} : vector<8x32xf32> to vector<8x8xf32>
    %78 = vector.extract_strided_slice %30 {offsets = [0, 24], sizes = [8, 8], strides = [1, 1]} : vector<8x32xf32> to vector<8x8xf32>
    %cst_38 = arith.constant dense<0.000000e+00> : vector<8x8xf32>
    %79 = tpu.matmul %76, %77, %cst_38 {dimension_numbers = #tpu.dot_dimension_numbers<[1], [1], [0], [0], [0, 0, 1, 0], [], []>} : vector<8x8xf32>, vector<8x8xf32>, vector<8x8xf32> -> vector<8x8xf32>
    %cst_39 = arith.constant 0.000000e+00 : f32
    %80 = vector.broadcast %cst_39 : f32 to vector<8x8xf32>
    %81 = arith.maximumf %79, %80 : vector<8x8xf32>
    %82 = arith.subf %79, %81 : vector<8x8xf32>
    %83 = math.exp %82 : vector<8x8xf32>
    %cst_40 = arith.constant 0.000000e+00 : f32
    %84 = vector.broadcast %cst_40 : f32 to vector<8x8xf32>
    %85 = arith.subf %84, %81 : vector<8x8xf32>
    %86 = math.exp %85 : vector<8x8xf32>
    %87 = arith.addf %86, %83 : vector<8x8xf32>
    %88 = arith.divf %0, %87 : vector<8x8xf32>
    %89 = arith.mulf %83, %88 : vector<8x8xf32>
    %cst_41 = arith.constant dense<0.000000e+00> : vector<8x8xf32>
    %90 = tpu.matmul %89, %78, %cst_41 {dimension_numbers = #tpu.dot_dimension_numbers<[1], [0], [0], [1], [0, 0, 1, 1], [], []>} : vector<8x8xf32>, vector<8x8xf32>, vector<8x8xf32> -> vector<8x8xf32>
    %91 = tpu.concatenate %45, %60, %75, %90 in 1 : vector<8x8xf32>, vector<8x8xf32>, vector<8x8xf32>, vector<8x8xf32> -> vector<8x32xf32>
    %cst_42 = arith.constant 0.000000e+00 : f32
    %92 = vector.broadcast %cst_42 : f32 to vector<8x32xf32>
    %93 = arith.maximumf %91, %92 : vector<8x32xf32>
    %94 = vector.broadcast %18 : vector<1x32xf32> to vector<8x32xf32>
    %95 = arith.mulf %93, %94 : vector<8x32xf32>
    %96 = vector.broadcast %19 : vector<1x32xf32> to vector<8x32xf32>
    %97 = arith.addf %95, %96 : vector<8x32xf32>
    %c0_43 = arith.constant 0 : index
    %c0_44 = arith.constant 0 : index
    %c0_45 = arith.constant 0 : index
    %98 = vector.load %arg5[%c0_43, %c0_44, %c0_45] : memref<2x8x32xf32, #tpu.memory_space<vmem>>, vector<1x8x32xf32>
    %99 = vector.shape_cast %98 : vector<1x8x32xf32> to vector<8x32xf32>
    %100 = vector.shape_cast %97 : vector<8x32xf32> to vector<1x8x32xf32>
    tpu.vector_store %arg5[%c0_43, %c0_44, %c0_45], %100 {strides = array<i32>} : memref<2x8x32xf32, #tpu.memory_space<vmem>>, vector<1x8x32xf32>,
    %101 = tpu.concatenate %8, %97 in 0 : vector<8x32xf32>, vector<8x32xf32> -> vector<16x32xf32>
    %c3_46 = arith.constant 3 : index
    %c0_47 = arith.constant 0 : index
    %c0_48 = arith.constant 0 : index
    %102 = vector.load %arg3[%c3_46, %c0_47, %c0_48] : memref<6x32x32xf32, #tpu.memory_space<vmem>>, vector<1x32x32xf32>
    %103 = vector.shape_cast %102 : vector<1x32x32xf32> to vector<32x32xf32>
    %c4_49 = arith.constant 4 : index
    %c0_50 = arith.constant 0 : index
    %c0_51 = arith.constant 0 : index
    %104 = vector.load %arg3[%c4_49, %c0_50, %c0_51] : memref<6x32x32xf32, #tpu.memory_space<vmem>>, vector<1x32x32xf32>
    %105 = vector.shape_cast %104 : vector<1x32x32xf32> to vector<32x32xf32>
    %c5_52 = arith.constant 5 : index
    %c0_53 = arith.constant 0 : index
    %c0_54 = arith.constant 0 : index
    %106 = vector.load %arg3[%c5_52, %c0_53, %c0_54] : memref<6x32x32xf32, #tpu.memory_space<vmem>>, vector<1x32x32xf32>
    %107 = vector.shape_cast %106 : vector<1x32x32xf32> to vector<32x32xf32>
    %c6 = arith.constant 6 : index
    %c0_55 = arith.constant 0 : index
    %108 = vector.load %arg4[%c6, %c0_55] : memref<11x32xf32, #tpu.memory_space<vmem>>, vector<1x32xf32>
    %c7 = arith.constant 7 : index
    %c0_56 = arith.constant 0 : index
    %109 = vector.load %arg4[%c7, %c0_56] : memref<11x32xf32, #tpu.memory_space<vmem>>, vector<1x32xf32>
    %c8 = arith.constant 8 : index
    %c0_57 = arith.constant 0 : index
    %110 = vector.load %arg4[%c8, %c0_57] : memref<11x32xf32, #tpu.memory_space<vmem>>, vector<1x32xf32>
    %c9 = arith.constant 9 : index
    %c0_58 = arith.constant 0 : index
    %111 = vector.load %arg4[%c9, %c0_58] : memref<11x32xf32, #tpu.memory_space<vmem>>, vector<1x32xf32>
    %c10 = arith.constant 10 : index
    %c0_59 = arith.constant 0 : index
    %112 = vector.load %arg4[%c10, %c0_59] : memref<11x32xf32, #tpu.memory_space<vmem>>, vector<1x32xf32>
    %113 = vector.extract_strided_slice %101 {offsets = [8, 0], sizes = [8, 32], strides = [1, 1]} : vector<16x32xf32> to vector<8x32xf32>
    %cst_60 = arith.constant dense<0.000000e+00> : vector<8x32xf32>
    %114 = tpu.matmul %113, %103, %cst_60 {dimension_numbers = #tpu.dot_dimension_numbers<[1], [0], [0], [1], [0, 0, 1, 1], [], []>} : vector<8x32xf32>, vector<32x32xf32>, vector<8x32xf32> -> vector<8x32xf32>
    %115 = vector.broadcast %108 : vector<1x32xf32> to vector<8x32xf32>
    %116 = arith.addf %114, %115 : vector<8x32xf32>
    %cst_61 = arith.constant 0.353553385 : f32
    %117 = vector.broadcast %cst_61 : f32 to vector<8x32xf32>
    %118 = arith.mulf %116, %117 : vector<8x32xf32>
    %cst_62 = arith.constant dense<0.000000e+00> : vector<16x32xf32>
    %119 = tpu.matmul %101, %105, %cst_62 {dimension_numbers = #tpu.dot_dimension_numbers<[1], [0], [0], [1], [0, 0, 1, 1], [], []>} : vector<16x32xf32>, vector<32x32xf32>, vector<16x32xf32> -> vector<16x32xf32>
    %120 = vector.broadcast %109 : vector<1x32xf32> to vector<16x32xf32>
    %121 = arith.addf %119, %120 : vector<16x32xf32>
    %cst_63 = arith.constant dense<0.000000e+00> : vector<16x32xf32>
    %122 = tpu.matmul %101, %107, %cst_63 {dimension_numbers = #tpu.dot_dimension_numbers<[1], [0], [0], [1], [0, 0, 1, 1], [], []>} : vector<16x32xf32>, vector<32x32xf32>, vector<16x32xf32> -> vector<16x32xf32>
    %123 = vector.broadcast %110 : vector<1x32xf32> to vector<16x32xf32>
    %124 = arith.addf %122, %123 : vector<16x32xf32>
    %125 = vector.extract_strided_slice %118 {offsets = [0, 0], sizes = [8, 8], strides = [1, 1]} : vector<8x32xf32> to vector<8x8xf32>
    %126 = vector.extract_strided_slice %121 {offsets = [0, 0], sizes = [16, 8], strides = [1, 1]} : vector<16x32xf32> to vector<16x8xf32>
    %127 = vector.extract_strided_slice %124 {offsets = [0, 0], sizes = [16, 8], strides = [1, 1]} : vector<16x32xf32> to vector<16x8xf32>
    %cst_64 = arith.constant dense<0.000000e+00> : vector<8x16xf32>
    %128 = tpu.matmul %125, %126, %cst_64 {dimension_numbers = #tpu.dot_dimension_numbers<[1], [1], [0], [0], [0, 0, 1, 0], [], []>} : vector<8x8xf32>, vector<16x8xf32>, vector<8x16xf32> -> vector<8x16xf32>
    %129 = vector.extract_strided_slice %128 {offsets = [0, 0], sizes = [8, 8], strides = [1, 1]} : vector<8x16xf32> to vector<8x8xf32>
    %130 = vector.extract_strided_slice %128 {offsets = [0, 8], sizes = [8, 8], strides = [1, 1]} : vector<8x16xf32> to vector<8x8xf32>
    %131 = arith.maximumf %129, %130 : vector<8x8xf32>
    %cst_65 = arith.constant 0.000000e+00 : f32
    %132 = vector.broadcast %cst_65 : f32 to vector<8x8xf32>
    %133 = arith.maximumf %131, %132 : vector<8x8xf32>
    %134 = arith.subf %129, %133 : vector<8x8xf32>
    %135 = math.exp %134 : vector<8x8xf32>
    %136 = arith.subf %130, %133 : vector<8x8xf32>
    %137 = math.exp %136 : vector<8x8xf32>
    %cst_66 = arith.constant 0.000000e+00 : f32
    %138 = vector.broadcast %cst_66 : f32 to vector<8x8xf32>
    %139 = arith.subf %138, %133 : vector<8x8xf32>
    %140 = math.exp %139 : vector<8x8xf32>
    %141 = arith.addf %140, %135 : vector<8x8xf32>
    %142 = arith.addf %141, %137 : vector<8x8xf32>
    %143 = arith.divf %0, %142 : vector<8x8xf32>
    %144 = arith.mulf %135, %143 : vector<8x8xf32>
    %145 = vector.extract_strided_slice %127 {offsets = [0, 0], sizes = [8, 8], strides = [1, 1]} : vector<16x8xf32> to vector<8x8xf32>
    %cst_67 = arith.constant dense<0.000000e+00> : vector<8x8xf32>
    %146 = tpu.matmul %144, %145, %cst_67 {dimension_numbers = #tpu.dot_dimension_numbers<[1], [0], [0], [1], [0, 0, 1, 1], [], []>} : vector<8x8xf32>, vector<8x8xf32>, vector<8x8xf32> -> vector<8x8xf32>
    %147 = arith.mulf %137, %143 : vector<8x8xf32>
    %148 = vector.extract_strided_slice %127 {offsets = [8, 0], sizes = [8, 8], strides = [1, 1]} : vector<16x8xf32> to vector<8x8xf32>
    %cst_68 = arith.constant dense<0.000000e+00> : vector<8x8xf32>
    %149 = tpu.matmul %147, %148, %cst_68 {dimension_numbers = #tpu.dot_dimension_numbers<[1], [0], [0], [1], [0, 0, 1, 1], [], []>} : vector<8x8xf32>, vector<8x8xf32>, vector<8x8xf32> -> vector<8x8xf32>
    %150 = arith.addf %146, %149 : vector<8x8xf32>
    %151 = vector.extract_strided_slice %118 {offsets = [0, 8], sizes = [8, 8], strides = [1, 1]} : vector<8x32xf32> to vector<8x8xf32>
    %152 = vector.extract_strided_slice %121 {offsets = [0, 8], sizes = [16, 8], strides = [1, 1]} : vector<16x32xf32> to vector<16x8xf32>
    %153 = vector.extract_strided_slice %124 {offsets = [0, 8], sizes = [16, 8], strides = [1, 1]} : vector<16x32xf32> to vector<16x8xf32>
    %cst_69 = arith.constant dense<0.000000e+00> : vector<8x16xf32>
    %154 = tpu.matmul %151, %152, %cst_69 {dimension_numbers = #tpu.dot_dimension_numbers<[1], [1], [0], [0], [0, 0, 1, 0], [], []>} : vector<8x8xf32>, vector<16x8xf32>, vector<8x16xf32> -> vector<8x16xf32>
    %155 = vector.extract_strided_slice %154 {offsets = [0, 0], sizes = [8, 8], strides = [1, 1]} : vector<8x16xf32> to vector<8x8xf32>
    %156 = vector.extract_strided_slice %154 {offsets = [0, 8], sizes = [8, 8], strides = [1, 1]} : vector<8x16xf32> to vector<8x8xf32>
    %157 = arith.maximumf %155, %156 : vector<8x8xf32>
    %cst_70 = arith.constant 0.000000e+00 : f32
    %158 = vector.broadcast %cst_70 : f32 to vector<8x8xf32>
    %159 = arith.maximumf %157, %158 : vector<8x8xf32>
    %160 = arith.subf %155, %159 : vector<8x8xf32>
    %161 = math.exp %160 : vector<8x8xf32>
    %162 = arith.subf %156, %159 : vector<8x8xf32>
    %163 = math.exp %162 : vector<8x8xf32>
    %cst_71 = arith.constant 0.000000e+00 : f32
    %164 = vector.broadcast %cst_71 : f32 to vector<8x8xf32>
    %165 = arith.subf %164, %159 : vector<8x8xf32>
    %166 = math.exp %165 : vector<8x8xf32>
    %167 = arith.addf %166, %161 : vector<8x8xf32>
    %168 = arith.addf %167, %163 : vector<8x8xf32>
    %169 = arith.divf %0, %168 : vector<8x8xf32>
    %170 = arith.mulf %161, %169 : vector<8x8xf32>
    %171 = vector.extract_strided_slice %153 {offsets = [0, 0], sizes = [8, 8], strides = [1, 1]} : vector<16x8xf32> to vector<8x8xf32>
    %cst_72 = arith.constant dense<0.000000e+00> : vector<8x8xf32>
    %172 = tpu.matmul %170, %171, %cst_72 {dimension_numbers = #tpu.dot_dimension_numbers<[1], [0], [0], [1], [0, 0, 1, 1], [], []>} : vector<8x8xf32>, vector<8x8xf32>, vector<8x8xf32> -> vector<8x8xf32>
    %173 = arith.mulf %163, %169 : vector<8x8xf32>
    %174 = vector.extract_strided_slice %153 {offsets = [8, 0], sizes = [8, 8], strides = [1, 1]} : vector<16x8xf32> to vector<8x8xf32>
    %cst_73 = arith.constant dense<0.000000e+00> : vector<8x8xf32>
    %175 = tpu.matmul %173, %174, %cst_73 {dimension_numbers = #tpu.dot_dimension_numbers<[1], [0], [0], [1], [0, 0, 1, 1], [], []>} : vector<8x8xf32>, vector<8x8xf32>, vector<8x8xf32> -> vector<8x8xf32>
    %176 = arith.addf %172, %175 : vector<8x8xf32>
    %177 = vector.extract_strided_slice %118 {offsets = [0, 16], sizes = [8, 8], strides = [1, 1]} : vector<8x32xf32> to vector<8x8xf32>
    %178 = vector.extract_strided_slice %121 {offsets = [0, 16], sizes = [16, 8], strides = [1, 1]} : vector<16x32xf32> to vector<16x8xf32>
    %179 = vector.extract_strided_slice %124 {offsets = [0, 16], sizes = [16, 8], strides = [1, 1]} : vector<16x32xf32> to vector<16x8xf32>
    %cst_74 = arith.constant dense<0.000000e+00> : vector<8x16xf32>
    %180 = tpu.matmul %177, %178, %cst_74 {dimension_numbers = #tpu.dot_dimension_numbers<[1], [1], [0], [0], [0, 0, 1, 0], [], []>} : vector<8x8xf32>, vector<16x8xf32>, vector<8x16xf32> -> vector<8x16xf32>
    %181 = vector.extract_strided_slice %180 {offsets = [0, 0], sizes = [8, 8], strides = [1, 1]} : vector<8x16xf32> to vector<8x8xf32>
    %182 = vector.extract_strided_slice %180 {offsets = [0, 8], sizes = [8, 8], strides = [1, 1]} : vector<8x16xf32> to vector<8x8xf32>
    %183 = arith.maximumf %181, %182 : vector<8x8xf32>
    %cst_75 = arith.constant 0.000000e+00 : f32
    %184 = vector.broadcast %cst_75 : f32 to vector<8x8xf32>
    %185 = arith.maximumf %183, %184 : vector<8x8xf32>
    %186 = arith.subf %181, %185 : vector<8x8xf32>
    %187 = math.exp %186 : vector<8x8xf32>
    %188 = arith.subf %182, %185 : vector<8x8xf32>
    %189 = math.exp %188 : vector<8x8xf32>
    %cst_76 = arith.constant 0.000000e+00 : f32
    %190 = vector.broadcast %cst_76 : f32 to vector<8x8xf32>
    %191 = arith.subf %190, %185 : vector<8x8xf32>
    %192 = math.exp %191 : vector<8x8xf32>
    %193 = arith.addf %192, %187 : vector<8x8xf32>
    %194 = arith.addf %193, %189 : vector<8x8xf32>
    %195 = arith.divf %0, %194 : vector<8x8xf32>
    %196 = arith.mulf %187, %195 : vector<8x8xf32>
    %197 = vector.extract_strided_slice %179 {offsets = [0, 0], sizes = [8, 8], strides = [1, 1]} : vector<16x8xf32> to vector<8x8xf32>
    %cst_77 = arith.constant dense<0.000000e+00> : vector<8x8xf32>
    %198 = tpu.matmul %196, %197, %cst_77 {dimension_numbers = #tpu.dot_dimension_numbers<[1], [0], [0], [1], [0, 0, 1, 1], [], []>} : vector<8x8xf32>, vector<8x8xf32>, vector<8x8xf32> -> vector<8x8xf32>
    %199 = arith.mulf %189, %195 : vector<8x8xf32>
    %200 = vector.extract_strided_slice %179 {offsets = [8, 0], sizes = [8, 8], strides = [1, 1]} : vector<16x8xf32> to vector<8x8xf32>
    %cst_78 = arith.constant dense<0.000000e+00> : vector<8x8xf32>
    %201 = tpu.matmul %199, %200, %cst_78 {dimension_numbers = #tpu.dot_dimension_numbers<[1], [0], [0], [1], [0, 0, 1, 1], [], []>} : vector<8x8xf32>, vector<8x8xf32>, vector<8x8xf32> -> vector<8x8xf32>
    %202 = arith.addf %198, %201 : vector<8x8xf32>
    %203 = vector.extract_strided_slice %118 {offsets = [0, 24], sizes = [8, 8], strides = [1, 1]} : vector<8x32xf32> to vector<8x8xf32>
    %204 = vector.extract_strided_slice %121 {offsets = [0, 24], sizes = [16, 8], strides = [1, 1]} : vector<16x32xf32> to vector<16x8xf32>
    %205 = vector.extract_strided_slice %124 {offsets = [0, 24], sizes = [16, 8], strides = [1, 1]} : vector<16x32xf32> to vector<16x8xf32>
    %cst_79 = arith.constant dense<0.000000e+00> : vector<8x16xf32>
    %206 = tpu.matmul %203, %204, %cst_79 {dimension_numbers = #tpu.dot_dimension_numbers<[1], [1], [0], [0], [0, 0, 1, 0], [], []>} : vector<8x8xf32>, vector<16x8xf32>, vector<8x16xf32> -> vector<8x16xf32>
    %207 = vector.extract_strided_slice %206 {offsets = [0, 0], sizes = [8, 8], strides = [1, 1]} : vector<8x16xf32> to vector<8x8xf32>
    %208 = vector.extract_strided_slice %206 {offsets = [0, 8], sizes = [8, 8], strides = [1, 1]} : vector<8x16xf32> to vector<8x8xf32>
    %209 = arith.maximumf %207, %208 : vector<8x8xf32>
    %cst_80 = arith.constant 0.000000e+00 : f32
    %210 = vector.broadcast %cst_80 : f32 to vector<8x8xf32>
    %211 = arith.maximumf %209, %210 : vector<8x8xf32>
    %212 = arith.subf %207, %211 : vector<8x8xf32>
    %213 = math.exp %212 : vector<8x8xf32>
    %214 = arith.subf %208, %211 : vector<8x8xf32>
    %215 = math.exp %214 : vector<8x8xf32>
    %cst_81 = arith.constant 0.000000e+00 : f32
    %216 = vector.broadcast %cst_81 : f32 to vector<8x8xf32>
    %217 = arith.subf %216, %211 : vector<8x8xf32>
    %218 = math.exp %217 : vector<8x8xf32>
    %219 = arith.addf %218, %213 : vector<8x8xf32>
    %220 = arith.addf %219, %215 : vector<8x8xf32>
    %221 = arith.divf %0, %220 : vector<8x8xf32>
    %222 = arith.mulf %213, %221 : vector<8x8xf32>
    %223 = vector.extract_strided_slice %205 {offsets = [0, 0], sizes = [8, 8], strides = [1, 1]} : vector<16x8xf32> to vector<8x8xf32>
    %cst_82 = arith.constant dense<0.000000e+00> : vector<8x8xf32>
    %224 = tpu.matmul %222, %223, %cst_82 {dimension_numbers = #tpu.dot_dimension_numbers<[1], [0], [0], [1], [0, 0, 1, 1], [], []>} : vector<8x8xf32>, vector<8x8xf32>, vector<8x8xf32> -> vector<8x8xf32>
    %225 = arith.mulf %215, %221 : vector<8x8xf32>
    %226 = vector.extract_strided_slice %205 {offsets = [8, 0], sizes = [8, 8], strides = [1, 1]} : vector<16x8xf32> to vector<8x8xf32>
    %cst_83 = arith.constant dense<0.000000e+00> : vector<8x8xf32>
    %227 = tpu.matmul %225, %226, %cst_83 {dimension_numbers = #tpu.dot_dimension_numbers<[1], [0], [0], [1], [0, 0, 1, 1], [], []>} : vector<8x8xf32>, vector<8x8xf32>, vector<8x8xf32> -> vector<8x8xf32>
    %228 = arith.addf %224, %227 : vector<8x8xf32>
    %229 = tpu.concatenate %150, %176, %202, %228 in 1 : vector<8x8xf32>, vector<8x8xf32>, vector<8x8xf32>, vector<8x8xf32> -> vector<8x32xf32>
    %cst_84 = arith.constant 0.000000e+00 : f32
    %230 = vector.broadcast %cst_84 : f32 to vector<8x32xf32>
    %231 = arith.maximumf %229, %230 : vector<8x32xf32>
    %232 = vector.broadcast %111 : vector<1x32xf32> to vector<8x32xf32>
    %233 = arith.mulf %231, %232 : vector<8x32xf32>
    %234 = vector.broadcast %112 : vector<1x32xf32> to vector<8x32xf32>
    %235 = arith.addf %233, %234 : vector<8x32xf32>
    %c1_85 = arith.constant 1 : index
    %c0_86 = arith.constant 0 : index
    %c0_87 = arith.constant 0 : index
    %236 = vector.load %arg5[%c1_85, %c0_86, %c0_87] : memref<2x8x32xf32, #tpu.memory_space<vmem>>, vector<1x8x32xf32>
    %237 = vector.shape_cast %236 : vector<1x8x32xf32> to vector<8x32xf32>
    %238 = vector.shape_cast %235 : vector<8x32xf32> to vector<1x8x32xf32>
    tpu.vector_store %arg5[%c1_85, %c0_86, %c0_87], %238 {strides = array<i32>} : memref<2x8x32xf32, #tpu.memory_space<vmem>>, vector<1x8x32xf32>,
    return
  }
}

</mosaic_0001>

<llo_original>
// kernel: tpu_custom_call.1
$region0: #{tpu_custom_call.1}
  #allocation0 [shape = 'u32[]', space=smem, size = 0x4, offset = 0x4, fixed_abs, tag = 'smem constant byte address 0x4 - core index']
  #allocation1 [shape = 'u32[144,128]{1,0:T(1,128)}', space=vmem, size = 0x12000, scoped, tag = 'internal scratch']
  %s0 = inlined_call_operand.hbm [shape: f32[8,16], index: 0, kind: input, shape index: {}]
  %s1 = inlined_call_operand.hbm [shape: f32[8,8], index: 1, kind: input, shape index: {}]
  %s2 = inlined_call_operand.hbm [shape: f32[16,32], index: 2, kind: input, shape index: {}]
  %s3 = inlined_call_operand.hbm [shape: f32[6,32,32], index: 3, kind: input, shape index: {}]
  %s4 = inlined_call_operand.hbm [shape: f32[11,32], index: 4, kind: input, shape index: {}]
  %s5 = inlined_call_operand.hbm [shape: f32[2,8,32], index: 5, kind: output, shape index: {}]
  %s6 = sld [smem:[#allocation0]]
  $region50: #{tpu_custom_call.1} parent=0
    _
  %s8 = ssub.s32 1, %s6
  %s9 = scalar_select 0, %s8, %s6
  $region1: #{tpu_custom_call.1} parent=0
    #allocation2 [shape = 'u8[4096]{0}', space=vmem, size = 0x1000, scoped, tag = 'input window, operand 0, single buffered']
    #allocation3 [shape = 's32[1]{0}', space=sflag, size = 0x4, scoped, tag = 'scoped memory for tpu_custom_call.1']
    #allocation4 [shape = 's32[1]{0}', space=sflag, size = 0x4, scoped, tag = 'scoped memory for tpu_custom_call.1']
    #allocation5 [shape = 'u8[4096]{0}', space=vmem, size = 0x1000, scoped, tag = 'input window, operand 1, single buffered']
    #allocation6 [shape = 's32[1]{0}', space=sflag, size = 0x4, scoped, tag = 'scoped memory for tpu_custom_call.1']
    #allocation7 [shape = 'u8[8192]{0}', space=vmem, size = 0x2000, scoped, tag = 'input window, operand 2, single buffered']
    #allocation8 [shape = 'u8[98304]{0}', space=vmem, size = 0x18000, scoped, tag = 'input window, operand 3, single buffered']
    #allocation9 [shape = 's32[1]{0}', space=sflag, size = 0x4, scoped, tag = 'scoped memory for tpu_custom_call.1']
    #allocation10 [shape = 'u8[8192]{0}', space=vmem, size = 0x2000, scoped, tag = 'input window, operand 4, single buffered']
    #allocation11 [shape = 'u8[8192]{0}', space=vmem, size = 0x2000, scoped, tag = 'output window, operand 0, single buffered']
    %10 = vsyncpa [#allocation3], 0
    %11 = vsyncpa [#allocation6], 0
    %12 = vsyncpa [#allocation9], 0
    %13 = vsyncpa [#allocation4], 0
    // Predicated region
    $region2: #{tpu_custom_call.1} parent=1 // pred_check
      _
    $region3: #{tpu_custom_call.1} parent=1 // pred_check_branch
      %15 = sbr.rel (0) target = $region5
    $region4: #{tpu_custom_call.1} parent=1 // pred_region
      %s17 = ssub.s32 128, 128
      %18 = vsyncadd [#allocation3], %s17
      %s20 = sshll.u32 [#allocation2], 4
      %s21 = int_to_ptr.vmem [resolvable:$true] %s20
      %23 = dma.hbm_to_vmem [thread:$0]  %s0, 128, %s21, [#allocation3]
    $region5: #{tpu_custom_call.1} parent=1 // pred_fallthru
      _
    // Predicated region
    $region6: #{tpu_custom_call.1} parent=1 // pred_check
      _
    $region7: #{tpu_custom_call.1} parent=1 // pred_check_branch
      %25 = sbr.rel (0) target = $region9
    $region8: #{tpu_custom_call.1} parent=1 // pred_region
      %s27 = ssub.s32 128, 128
      %28 = vsyncadd [#allocation6], %s27
      %s30 = sshll.u32 [#allocation5], 4
      %s31 = int_to_ptr.vmem [resolvable:$true] %s30
      %33 = dma.hbm_to_vmem [thread:$0]  %s1, 128, %s31, [#allocation6]
    $region9: #{tpu_custom_call.1} parent=1 // pred_fallthru
      _
    // Predicated region
    $region10: #{tpu_custom_call.1} parent=1 // pred_check
      _
    $region11: #{tpu_custom_call.1} parent=1 // pred_check_branch
      %35 = sbr.rel (0) target = $region13
    $region12: #{tpu_custom_call.1} parent=1 // pred_region
      %s37 = ssub.s32 256, 256
      %38 = vsyncadd [#allocation6], %s37
      %s39 = sshll.u32 [#allocation7], 4
      %s40 = int_to_ptr.vmem [resolvable:$true] %s39
      %45 = dma.hbm_to_vmem [thread:$0]  %s2, 256, %s40, [#allocation6], 128, 128, 8
    $region13: #{tpu_custom_call.1} parent=1 // pred_fallthru
      _
    // Predicated region
    $region14: #{tpu_custom_call.1} parent=1 // pred_check
      _
    $region15: #{tpu_custom_call.1} parent=1 // pred_check_branch
      %47 = sbr.rel (0) target = $region17
    $region16: #{tpu_custom_call.1} parent=1 // pred_region
      %s49 = ssub.s32 3072, 3072
      %50 = vsyncadd [#allocation9], %s49
      %s51 = sshll.u32 [#allocation8], 4
      %s52 = int_to_ptr.vmem [resolvable:$true] %s51
      %57 = dma.hbm_to_vmem [thread:$0]  %s3, 3072, %s52, [#allocation9], 128, 128, 8
    $region17: #{tpu_custom_call.1} parent=1 // pred_fallthru
      _
    // Predicated region
    $region18: #{tpu_custom_call.1} parent=1 // pred_check
      _
    $region19: #{tpu_custom_call.1} parent=1 // pred_check_branch
      %59 = sbr.rel (0) target = $region21
    $region20: #{tpu_custom_call.1} parent=1 // pred_region
      %s61 = ssub.s32 256, 256
      %62 = vsyncadd [#allocation9], %s61
      %s63 = sshll.u32 [#allocation10], 4
      %s64 = int_to_ptr.vmem [resolvable:$true] %s63
      %69 = dma.hbm_to_vmem [thread:$0]  %s4, 256, %s64, [#allocation9], 128, 128, 8
    $region21: #{tpu_custom_call.1} parent=1 // pred_fallthru
      _
    // Predicated region
    $region22: #{tpu_custom_call.1} parent=1 // pred_check
      _
    $region23: #{tpu_custom_call.1} parent=1 // pred_check_branch
      %71 = sbr.rel (0) target = $region25
    $region24: #{tpu_custom_call.1} parent=1 // pred_region
      %72 = dma.done [#allocation3], 128
    $region25: #{tpu_custom_call.1} parent=1 // pred_fallthru
      _
    // Predicated region
    $region26: #{tpu_custom_call.1} parent=1 // pred_check
      _
    $region27: #{tpu_custom_call.1} parent=1 // pred_check_branch
      %74 = sbr.rel (0) target = $region29
    $region28: #{tpu_custom_call.1} parent=1 // pred_region
      %75 = dma.done [#allocation6], 128
    $region29: #{tpu_custom_call.1} parent=1 // pred_fallthru
      _
    // Predicated region
    $region30: #{tpu_custom_call.1} parent=1 // pred_check
      _
    $region31: #{tpu_custom_call.1} parent=1 // pred_check_branch
      %77 = sbr.rel (0) target = $region33
    $region32: #{tpu_custom_call.1} parent=1 // pred_region
      %78 = dma.done [#allocation6], 256
    $region33: #{tpu_custom_call.1} parent=1 // pred_fallthru
      _
    // Predicated region
    $region34: #{tpu_custom_call.1} parent=1 // pred_check
      _
    $region35: #{tpu_custom_call.1} parent=1 // pred_check_branch
      %80 = sbr.rel (0) target = $region37
    $region36: #{tpu_custom_call.1} parent=1 // pred_region
      %81 = dma.done [#allocation9], 3072
    $region37: #{tpu_custom_call.1} parent=1 // pred_fallthru
      _
    // Predicated region
    $region38: #{tpu_custom_call.1} parent=1 // pred_check
      _
    $region39: #{tpu_custom_call.1} parent=1 // pred_check_branch
      %83 = sbr.rel (0) target = $region41
    $region40: #{tpu_custom_call.1} parent=1 // pred_region
      %84 = dma.done [#allocation9], 256
    $region41: #{tpu_custom_call.1} parent=1 // pred_fallthru
      _
    %v85 = vld [vmem:[#allocation5] sm:$0xff]
    %v86 = vld [vmem:[#allocation2] sm:$0xff]
    %v87 = vld [vmem:[#allocation7] sm:$0xff]
    %v88 = vld [vmem:[#allocation7 + $0x8] sm:$0xff]
    %v89 = vld [vmem:[#allocation10] sm:$0x1]
    %v90 = vlaneseq
    %v91 = vshrl.u32 %v90, 7
    %v92 = vsub.s32 0, %v91
    %v93 = vrot.slane %v89, %v92
    %vm94 = vcmask 130048
    %v96 = vsel %vm94, %v86, 0
    %98 = vmatprep.subr.mxu0 0.0
    %99 = vmatpush1.msra.mxu0 %v87
    %100 = vmatprep.subr.mxu0 0.0
    %101 = vmatpush1.msra.mxu0 %v88
    %102 = vmatprep.subr.mxu0 0.0
    %103 = vmatpush1.msra.mxu0 0.0
    %104 = vmatprep.subr.mxu0 0.0
    %105 = vmatpush1.msra.mxu0 0.0
    %106 = vmatprep.subr.mxu0 0.0
    %107 = vmatpush1.msra.mxu0 0.0
    %108 = vmatprep.subr.mxu0 0.0
    %109 = vmatpush1.msra.mxu0 0.0
    %110 = vmatprep.subr.mxu0 0.0
    %111 = vmatpush1.msra.mxu0 0.0
    %112 = vmatprep.subr.mxu0 0.0
    %113 = vmatpush1.msra.mxu0 0.0
    %114 = vmatprep.subr.mxu0 0.0
    %115 = vmatpush1.msra.mxu0 0.0
    %116 = vmatprep.subr.mxu0 0.0
    %117 = vmatpush1.msra.mxu0 0.0
    %118 = vmatprep.subr.mxu0 0.0
    %119 = vmatpush1.msra.mxu0 0.0
    %120 = vmatprep.subr.mxu0 0.0
    %121 = vmatpush1.msra.mxu0 0.0
    %122 = vmatprep.subr.mxu0 0.0
    %123 = vmatpush1.msra.mxu0 0.0
    %124 = vmatprep.subr.mxu0 0.0
    %125 = vmatpush1.msra.mxu0 0.0
    %126 = vmatprep.subr.mxu0 0.0
    %127 = vmatpush1.msra.mxu0 0.0
    %128 = vmatprep.subr.mxu0 0.0
    %129 = vmatpush1.msra.mxu0 0.0
    %130 = vmatprep.subr.mxu0 0.0
    %131 = vmatpush1.msra.mxu0 0.0
    %132 = vmatprep.subr.mxu0 0.0
    %133 = vmatpush1.msra.mxu0 0.0
    %134 = vmatprep.subr.mxu0 0.0
    %135 = vmatpush1.msra.mxu0 0.0
    %136 = vmatprep.subr.mxu0 0.0
    %137 = vmatpush1.msra.mxu0 0.0
    %138 = vmatprep.subr.mxu0 0.0
    %139 = vmatpush1.msra.mxu0 0.0
    %140 = vmatprep.subr.mxu0 0.0
    %141 = vmatpush1.msra.mxu0 0.0
    %142 = vmatprep.subr.mxu0 0.0
    %143 = vmatpush1.msra.mxu0 0.0
    %144 = vmatprep.subr.mxu0 0.0
    %145 = vmatpush1.msra.mxu0 0.0
    %146 = vmatprep.subr.mxu0 0.0
    %147 = vmatpush1.msra.mxu0 0.0
    %148 = vmatprep.subr.mxu0 0.0
    %149 = vmatpush1.msra.mxu0 0.0
    %150 = vmatprep.subr.mxu0 0.0
    %151 = vmatpush1.msra.mxu0 0.0
    %152 = vmatprep.subr.mxu0 0.0
    %153 = vmatpush1.msra.mxu0 0.0
    %154 = vmatprep.subr.mxu0 0.0
    %155 = vmatpush1.msra.mxu0 0.0
    %156 = vmatprep.subr.mxu0 0.0
    %157 = vmatpush1.msra.mxu0 0.0
    %158 = vmatprep.subr.mxu0 0.0
    %159 = vmatpush1.msra.mxu0 0.0
    %160 = vmatprep.subr.mxu0 0.0
    %161 = vmatpush1.msra.mxu0 0.0
    %162 = vmatprep.mubr.f32.mxu0 0.0
    %163 = vmatmul.mubr.f32.gmra.mrb[0].mxu0 %v96
    %v164 = vpop.f32.mrb[0].mxu0
    %v165 = vadd.f32 %v93, %v164
    %v166 = vpop.f32.mrb[0].mxu0
    %167 = vdwg.mxu0
    %v168 = vmax.f32 %v165, 0.0
    %v169 = vld [vmem:[#allocation8] sm:$0xff]
    %v170 = vld [vmem:[#allocation8 + $0x8] sm:$0xff]
    %v171 = vld [vmem:[#allocation8 + $0x10] sm:$0xff]
    %v172 = vld [vmem:[#allocation8 + $0x18] sm:$0xff]
    %s173 = scalar_lea.vmem [#allocation8], 32
    %v174 = vld [vmem:[%s173] sm:$0xff]
    %v175 = vld [vmem:[%s173 + $0x8] sm:$0xff]
    %v176 = vld [vmem:[%s173 + $0x10] sm:$0xff]
    %v177 = vld [vmem:[%s173 + $0x18] sm:$0xff]
    %s178 = scalar_lea.vmem [#allocation8], 64
    %v179 = vld [vmem:[%s178] sm:$0xff]
    %v180 = vld [vmem:[%s178 + $0x8] sm:$0xff]
    %v181 = vld [vmem:[%s178 + $0x10] sm:$0xff]
    %v182 = vld [vmem:[%s178 + $0x18] sm:$0xff]
    %v183 = vld [vmem:[#allocation10 + $0x1] sm:$0x1]
    %v184 = vld [vmem:[#allocation10 + $0x2] sm:$0x1]
    %v185 = vld [vmem:[#allocation10 + $0x3] sm:$0x1]
    %v186 = vld [vmem:[#allocation10 + $0x4] sm:$0x1]
    %v187 = vld [vmem:[#allocation10 + $0x5] sm:$0x1]
    %v188 = vlaneseq
    %v189 = vshrl.u32 %v188, 7
    %v190 = vsub.s32 0, %v189
    %v191 = vrot.slane %v183, %v190
    %vm192 = vcmask 261120
    %v194 = vsel %vm192, %v168, 0
    %196 = vmatprep.subr.mxu0 0.0
    %197 = vmatpush1.msra.mxu0 %v169
    %198 = vmatprep.subr.mxu0 0.0
    %199 = vmatpush1.msra.mxu0 %v170
    %200 = vmatprep.subr.mxu0 0.0
    %201 = vmatpush1.msra.mxu0 %v171
    %202 = vmatprep.subr.mxu0 0.0
    %203 = vmatpush1.msra.mxu0 %v172
    %204 = vmatprep.subr.mxu0 0.0
    %205 = vmatpush1.msra.mxu0 0.0
    %206 = vmatprep.subr.mxu0 0.0
    %207 = vmatpush1.msra.mxu0 0.0
    %208 = vmatprep.subr.mxu0 0.0
    %209 = vmatpush1.msra.mxu0 0.0
    %210 = vmatprep.subr.mxu0 0.0
    %211 = vmatpush1.msra.mxu0 0.0
    %212 = vmatprep.subr.mxu0 0.0
    %213 = vmatpush1.msra.mxu0 0.0
    %214 = vmatprep.subr.mxu0 0.0
    %215 = vmatpush1.msra.mxu0 0.0
    %216 = vmatprep.subr.mxu0 0.0
    %217 = vmatpush1.msra.mxu0 0.0
    %218 = vmatprep.subr.mxu0 0.0
    %219 = vmatpush1.msra.mxu0 0.0
    %220 = vmatprep.subr.mxu0 0.0
    %221 = vmatpush1.msra.mxu0 0.0
    %222 = vmatprep.subr.mxu0 0.0
    %223 = vmatpush1.msra.mxu0 0.0
    %224 = vmatprep.subr.mxu0 0.0
    %225 = vmatpush1.msra.mxu0 0.0
    %226 = vmatprep.subr.mxu0 0.0
    %227 = vmatpush1.msra.mxu0 0.0
    %228 = vmatprep.subr.mxu0 0.0
    %229 = vmatpush1.msra.mxu0 0.0
    %230 = vmatprep.subr.mxu0 0.0
    %231 = vmatpush1.msra.mxu0 0.0
    %232 = vmatprep.subr.mxu0 0.0
    %233 = vmatpush1.msra.mxu0 0.0
    %234 = vmatprep.subr.mxu0 0.0
    %235 = vmatpush1.msra.mxu0 0.0
    %236 = vmatprep.subr.mxu0 0.0
    %237 = vmatpush1.msra.mxu0 0.0
    %238 = vmatprep.subr.mxu0 0.0
    %239 = vmatpush1.msra.mxu0 0.0
    %240 = vmatprep.subr.mxu0 0.0
    %241 = vmatpush1.msra.mxu0 0.0
    %242 = vmatprep.subr.mxu0 0.0
    %243 = vmatpush1.msra.mxu0 0.0
    %244 = vmatprep.subr.mxu0 0.0
    %245 = vmatpush1.msra.mxu0 0.0
    %246 = vmatprep.subr.mxu0 0.0
    %247 = vmatpush1.msra.mxu0 0.0
    %248 = vmatprep.subr.mxu0 0.0
    %249 = vmatpush1.msra.mxu0 0.0
    %250 = vmatprep.subr.mxu0 0.0
    %251 = vmatpush1.msra.mxu0 0.0
    %252 = vmatprep.subr.mxu0 0.0
    %253 = vmatpush1.msra.mxu0 0.0
    %254 = vmatprep.subr.mxu0 0.0
    %255 = vmatpush1.msra.mxu0 0.0
    %256 = vmatprep.subr.mxu0 0.0
    %257 = vmatpush1.msra.mxu0 0.0
    %258 = vmatprep.subr.mxu0 0.0
    %259 = vmatpush1.msra.mxu0 0.0
    %260 = vmatprep.mubr.f32.mxu0 0.0
    %261 = vmatmul.mubr.f32.gmra.mrb[0].mxu0 %v194
    %v262 = vpop.f32.mrb[0].mxu0
    %v263 = vadd.f32 %v191, %v262
    %v264 = vpop.f32.mrb[0].mxu0
    %265 = vdwg.mxu0
    %v266 = vmul.f32 %v263, 0.35355338
    %v267 = vlaneseq
    %v268 = vshrl.u32 %v267, 7
    %v269 = vsub.s32 0, %v268
    %v270 = vrot.slane %v184, %v269
    %271 = vmatprep.subr.mxu0 0.0
    %272 = vmatpush1.msra.mxu0 %v174
    %273 = vmatprep.subr.mxu0 0.0
    %274 = vmatpush1.msra.mxu0 %v175
    %275 = vmatprep.subr.mxu0 0.0
    %276 = vmatpush1.msra.mxu0 %v176
    %277 = vmatprep.subr.mxu0 0.0
    %278 = vmatpush1.msra.mxu0 %v177
    %279 = vmatprep.subr.mxu0 0.0
    %280 = vmatpush1.msra.mxu0 0.0
    %281 = vmatprep.subr.mxu0 0.0
    %282 = vmatpush1.msra.mxu0 0.0
    %283 = vmatprep.subr.mxu0 0.0
    %284 = vmatpush1.msra.mxu0 0.0
    %285 = vmatprep.subr.mxu0 0.0
    %286 = vmatpush1.msra.mxu0 0.0
    %287 = vmatprep.subr.mxu0 0.0
    %288 = vmatpush1.msra.mxu0 0.0
    %289 = vmatprep.subr.mxu0 0.0
    %290 = vmatpush1.msra.mxu0 0.0
    %291 = vmatprep.subr.mxu0 0.0
    %292 = vmatpush1.msra.mxu0 0.0
    %293 = vmatprep.subr.mxu0 0.0
    %294 = vmatpush1.msra.mxu0 0.0
    %295 = vmatprep.subr.mxu0 0.0
    %296 = vmatpush1.msra.mxu0 0.0
    %297 = vmatprep.subr.mxu0 0.0
    %298 = vmatpush1.msra.mxu0 0.0
    %299 = vmatprep.subr.mxu0 0.0
    %300 = vmatpush1.msra.mxu0 0.0
    %301 = vmatprep.subr.mxu0 0.0
    %302 = vmatpush1.msra.mxu0 0.0
    %303 = vmatprep.subr.mxu0 0.0
    %304 = vmatpush1.msra.mxu0 0.0
    %305 = vmatprep.subr.mxu0 0.0
    %306 = vmatpush1.msra.mxu0 0.0
    %307 = vmatprep.subr.mxu0 0.0
    %308 = vmatpush1.msra.mxu0 0.0
    %309 = vmatprep.subr.mxu0 0.0
    %310 = vmatpush1.msra.mxu0 0.0
    %311 = vmatprep.subr.mxu0 0.0
    %312 = vmatpush1.msra.mxu0 0.0
    %313 = vmatprep.subr.mxu0 0.0
    %314 = vmatpush1.msra.mxu0 0.0
    %315 = vmatprep.subr.mxu0 0.0
    %316 = vmatpush1.msra.mxu0 0.0
    %317 = vmatprep.subr.mxu0 0.0
    %318 = vmatpush1.msra.mxu0 0.0
    %319 = vmatprep.subr.mxu0 0.0
    %320 = vmatpush1.msra.mxu0 0.0
    %321 = vmatprep.subr.mxu0 0.0
    %322 = vmatpush1.msra.mxu0 0.0
    %323 = vmatprep.subr.mxu0 0.0
    %324 = vmatpush1.msra.mxu0 0.0
    %325 = vmatprep.subr.mxu0 0.0
    %326 = vmatpush1.msra.mxu0 0.0
    %327 = vmatprep.subr.mxu0 0.0
    %328 = vmatpush1.msra.mxu0 0.0
    %329 = vmatprep.subr.mxu0 0.0
    %330 = vmatpush1.msra.mxu0 0.0
    %331 = vmatprep.subr.mxu0 0.0
    %332 = vmatpush1.msra.mxu0 0.0
    %333 = vmatprep.subr.mxu0 0.0
    %334 = vmatpush1.msra.mxu0 0.0
    %335 = vmatprep.mubr.f32.mxu0 0.0
    %336 = vmatmul.mubr.f32.gmra.mrb[0].mxu0 %v194
    %v337 = vpop.f32.mrb[0].mxu0
    %v338 = vadd.f32 %v270, %v337
    %v339 = vpop.f32.mrb[0].mxu0
    %340 = vdwg.mxu0
    %v341 = vlaneseq
    %v342 = vshrl.u32 %v341, 7
    %v343 = vsub.s32 0, %v342
    %v344 = vrot.slane %v185, %v343
    %345 = vmatprep.subr.mxu0 0.0
    %346 = vmatpush1.msra.mxu0 %v179
    %347 = vmatprep.subr.mxu0 0.0
    %348 = vmatpush1.msra.mxu0 %v180
    %349 = vmatprep.subr.mxu0 0.0
    %350 = vmatpush1.msra.mxu0 %v181
    %351 = vmatprep.subr.mxu0 0.0
    %352 = vmatpush1.msra.mxu0 %v182
    %353 = vmatprep.subr.mxu0 0.0
    %354 = vmatpush1.msra.mxu0 0.0
    %355 = vmatprep.subr.mxu0 0.0
    %356 = vmatpush1.msra.mxu0 0.0
    %357 = vmatprep.subr.mxu0 0.0
    %358 = vmatpush1.msra.mxu0 0.0
    %359 = vmatprep.subr.mxu0 0.0
    %360 = vmatpush1.msra.mxu0 0.0
    %361 = vmatprep.subr.mxu0 0.0
    %362 = vmatpush1.msra.mxu0 0.0
    %363 = vmatprep.subr.mxu0 0.0
    %364 = vmatpush1.msra.mxu0 0.0
    %365 = vmatprep.subr.mxu0 0.0
    %366 = vmatpush1.msra.mxu0 0.0
    %367 = vmatprep.subr.mxu0 0.0
    %368 = vmatpush1.msra.mxu0 0.0
    %369 = vmatprep.subr.mxu0 0.0
    %370 = vmatpush1.msra.mxu0 0.0
    %371 = vmatprep.subr.mxu0 0.0
    %372 = vmatpush1.msra.mxu0 0.0
    %373 = vmatprep.subr.mxu0 0.0
    %374 = vmatpush1.msra.mxu0 0.0
    %375 = vmatprep.subr.mxu0 0.0
    %376 = vmatpush1.msra.mxu0 0.0
    %377 = vmatprep.subr.mxu0 0.0
    %378 = vmatpush1.msra.mxu0 0.0
    %379 = vmatprep.subr.mxu0 0.0
    %380 = vmatpush1.msra.mxu0 0.0
    %381 = vmatprep.subr.mxu0 0.0
    %382 = vmatpush1.msra.mxu0 0.0
    %383 = vmatprep.subr.mxu0 0.0
    %384 = vmatpush1.msra.mxu0 0.0
    %385 = vmatprep.subr.mxu0 0.0
    %386 = vmatpush1.msra.mxu0 0.0
    %387 = vmatprep.subr.mxu0 0.0
    %388 = vmatpush1.msra.mxu0 0.0
    %389 = vmatprep.subr.mxu0 0.0
    %390 = vmatpush1.msra.mxu0 0.0
    %391 = vmatprep.subr.mxu0 0.0
    %392 = vmatpush1.msra.mxu0 0.0
    %393 = vmatprep.subr.mxu0 0.0
    %394 = vmatpush1.msra.mxu0 0.0
    %395 = vmatprep.subr.mxu0 0.0
    %396 = vmatpush1.msra.mxu0 0.0
    %397 = vmatprep.subr.mxu0 0.0
    %398 = vmatpush1.msra.mxu0 0.0
    %399 = vmatprep.subr.mxu0 0.0
    %400 = vmatpush1.msra.mxu0 0.0
    %401 = vmatprep.subr.mxu0 0.0
    %402 = vmatpush1.msra.mxu0 0.0
    %403 = vmatprep.subr.mxu0 0.0
    %404 = vmatpush1.msra.mxu0 0.0
    %405 = vmatprep.subr.mxu0 0.0
    %406 = vmatpush1.msra.mxu0 0.0
    %407 = vmatprep.subr.mxu0 0.0
    %408 = vmatpush1.msra.mxu0 0.0
    %409 = vmatprep.mubr.f32.mxu0 0.0
    %410 = vmatmul.mubr.f32.gmra.mrb[0].mxu0 %v194
    %v411 = vpop.f32.mrb[0].mxu0
    %v412 = vadd.f32 %v344, %v411
    %v413 = vpop.f32.mrb[0].mxu0
    %414 = vdwg.mxu0
    %vm415 = vcmask 64512
    %v417 = vsel %vm415, %v266, 0
    %v420 = vsel %vm415, %v338, 0
    %422 = vmatprep.subr.mxu0 0.0
    %423 = vmatpush1.xpose.msra.mxu0 %v420
    %424 = vmatprep.subr.mxu0 0.0
    %425 = vmatpush1.xpose.msra.mxu0 0.0
    %426 = vmatprep.subr.mxu0 0.0
    %427 = vmatpush1.xpose.msra.mxu0 0.0
    %428 = vmatprep.subr.mxu0 0.0
    %429 = vmatpush1.xpose.msra.mxu0 0.0
    %430 = vmatprep.subr.mxu0 0.0
    %431 = vmatpush1.xpose.msra.mxu0 0.0
    %432 = vmatprep.subr.mxu0 0.0
    %433 = vmatpush1.xpose.msra.mxu0 0.0
    %434 = vmatprep.subr.mxu0 0.0
    %435 = vmatpush1.xpose.msra.mxu0 0.0
    %436 = vmatprep.subr.mxu0 0.0
    %437 = vmatpush1.xpose.msra.mxu0 0.0
    %438 = vmatprep.subr.mxu0 0.0
    %439 = vmatpush1.xpose.msra.mxu0 0.0
    %440 = vmatprep.subr.mxu0 0.0
    %441 = vmatpush1.xpose.msra.mxu0 0.0
    %442 = vmatprep.subr.mxu0 0.0
    %443 = vmatpush1.xpose.msra.mxu0 0.0
    %444 = vmatprep.subr.mxu0 0.0
    %445 = vmatpush1.xpose.msra.mxu0 0.0
    %446 = vmatprep.subr.mxu0 0.0
    %447 = vmatpush1.xpose.msra.mxu0 0.0
    %448 = vmatprep.subr.mxu0 0.0
    %449 = vmatpush1.xpose.msra.mxu0 0.0
    %450 = vmatprep.subr.mxu0 0.0
    %451 = vmatpush1.xpose.msra.mxu0 0.0
    %452 = vmatprep.subr.mxu0 0.0
    %453 = vmatpush1.xpose.msra.mxu0 0.0
    %454 = vmatprep.subr.mxu0 0.0
    %455 = vmatpush1.xpose.msra.mxu0 0.0
    %456 = vmatprep.subr.mxu0 0.0
    %457 = vmatpush1.xpose.msra.mxu0 0.0
    %458 = vmatprep.subr.mxu0 0.0
    %459 = vmatpush1.xpose.msra.mxu0 0.0
    %460 = vmatprep.subr.mxu0 0.0
    %461 = vmatpush1.xpose.msra.mxu0 0.0
    %462 = vmatprep.subr.mxu0 0.0
    %463 = vmatpush1.xpose.msra.mxu0 0.0
    %464 = vmatprep.subr.mxu0 0.0
    %465 = vmatpush1.xpose.msra.mxu0 0.0
    %466 = vmatprep.subr.mxu0 0.0
    %467 = vmatpush1.xpose.msra.mxu0 0.0
    %468 = vmatprep.subr.mxu0 0.0
    %469 = vmatpush1.xpose.msra.mxu0 0.0
    %470 = vmatprep.subr.mxu0 0.0
    %471 = vmatpush1.xpose.msra.mxu0 0.0
    %472 = vmatprep.subr.mxu0 0.0
    %473 = vmatpush1.xpose.msra.mxu0 0.0
    %474 = vmatprep.subr.mxu0 0.0
    %475 = vmatpush1.xpose.msra.mxu0 0.0
    %476 = vmatprep.subr.mxu0 0.0
    %477 = vmatpush1.xpose.msra.mxu0 0.0
    %478 = vmatprep.subr.mxu0 0.0
    %479 = vmatpush1.xpose.msra.mxu0 0.0
    %480 = vmatprep.subr.mxu0 0.0
    %481 = vmatpush1.xpose.msra.mxu0 0.0
    %482 = vmatprep.subr.mxu0 0.0
    %483 = vmatpush1.xpose.msra.mxu0 0.0
    %484 = vmatprep.subr.mxu0 0.0
    %485 = vmatpush1.xpose.msra.mxu0 0.0
    %486 = vmatprep.mubr.f32.mxu0 0.0
    %487 = vmatmul.mubr.f32.gmra.mrb[0].mxu0 %v417
    %v488 = vpop.f32.mrb[0].mxu0
    %v489 = vadd.f32 0.0, %v488
    %v490 = vpop.f32.mrb[0].mxu0
    %491 = vdwg.mxu0
    %v492 = vmax.f32 %v489, 0.0
    %v493 = vsub.f32 %v489, %v492
    %v494 = vmul.f32 %v493, 1.442695
    %v495 = vpow.pop %v494
    %v496 = vsub.f32 0.0, %v492
    %v497 = vmul.f32 %v496, 1.442695
    %v498 = vpow.pop %v497
    %v499 = vadd.f32 %v498, %v495
    %v500 = vrcp.pop %v499
    %v501 = vmul.f32 %v85, %v500
    %v502 = vmul.f32 %v495, %v501
    %v504 = vsel %vm415, %v502, 0
    %506 = vmatprep.subr.mxu0 0.0
    %507 = vmatpush1.msra.mxu0 %v412
    %508 = vmatprep.subr.mxu0 0.0
    %509 = vmatpush1.msra.mxu0 0.0
    %510 = vmatprep.subr.mxu0 0.0
    %511 = vmatpush1.msra.mxu0 0.0
    %512 = vmatprep.subr.mxu0 0.0
    %513 = vmatpush1.msra.mxu0 0.0
    %514 = vmatprep.subr.mxu0 0.0
    %515 = vmatpush1.msra.mxu0 0.0
    %516 = vmatprep.subr.mxu0 0.0
    %517 = vmatpush1.msra.mxu0 0.0
    %518 = vmatprep.subr.mxu0 0.0
    %519 = vmatpush1.msra.mxu0 0.0
    %520 = vmatprep.subr.mxu0 0.0
    %521 = vmatpush1.msra.mxu0 0.0
    %522 = vmatprep.subr.mxu0 0.0
    %523 = vmatpush1.msra.mxu0 0.0
    %524 = vmatprep.subr.mxu0 0.0
    %525 = vmatpush1.msra.mxu0 0.0
    %526 = vmatprep.subr.mxu0 0.0
    %527 = vmatpush1.msra.mxu0 0.0
    %528 = vmatprep.subr.mxu0 0.0
    %529 = vmatpush1.msra.mxu0 0.0
    %530 = vmatprep.subr.mxu0 0.0
    %531 = vmatpush1.msra.mxu0 0.0
    %532 = vmatprep.subr.mxu0 0.0
    %533 = vmatpush1.msra.mxu0 0.0
    %534 = vmatprep.subr.mxu0 0.0
    %535 = vmatpush1.msra.mxu0 0.0
    %536 = vmatprep.subr.mxu0 0.0
    %537 = vmatpush1.msra.mxu0 0.0
    %538 = vmatprep.subr.mxu0 0.0
    %539 = vmatpush1.msra.mxu0 0.0
    %540 = vmatprep.subr.mxu0 0.0
    %541 = vmatpush1.msra.mxu0 0.0
    %542 = vmatprep.subr.mxu0 0.0
    %543 = vmatpush1.msra.mxu0 0.0
    %544 = vmatprep.subr.mxu0 0.0
    %545 = vmatpush1.msra.mxu0 0.0
    %546 = vmatprep.subr.mxu0 0.0
    %547 = vmatpush1.msra.mxu0 0.0
    %548 = vmatprep.subr.mxu0 0.0
    %549 = vmatpush1.msra.mxu0 0.0
    %550 = vmatprep.subr.mxu0 0.0
    %551 = vmatpush1.msra.mxu0 0.0
    %552 = vmatprep.subr.mxu0 0.0
    %553 = vmatpush1.msra.mxu0 0.0
    %554 = vmatprep.subr.mxu0 0.0
    %555 = vmatpush1.msra.mxu0 0.0
    %556 = vmatprep.subr.mxu0 0.0
    %557 = vmatpush1.msra.mxu0 0.0
    %558 = vmatprep.subr.mxu0 0.0
    %559 = vmatpush1.msra.mxu0 0.0
    %560 = vmatprep.subr.mxu0 0.0
    %561 = vmatpush1.msra.mxu0 0.0
    %562 = vmatprep.subr.mxu0 0.0
    %563 = vmatpush1.msra.mxu0 0.0
    %564 = vmatprep.subr.mxu0 0.0
    %565 = vmatpush1.msra.mxu0 0.0
    %566 = vmatprep.subr.mxu0 0.0
    %567 = vmatpush1.msra.mxu0 0.0
    %568 = vmatprep.subr.mxu0 0.0
    %569 = vmatpush1.msra.mxu0 0.0
    %570 = vmatprep.mubr.f32.mxu0 0.0
    %571 = vmatmul.mubr.f32.gmra.mrb[0].mxu0 %v504
    %v572 = vpop.f32.mrb[0].mxu0
    %v573 = vadd.f32 0.0, %v572
    %v574 = vpop.f32.mrb[0].mxu0
    %575 = vdwg.mxu0
    %576 = vrot.lane.b32.xlu0 %v266, 120
    %v577 = vpop.permute.xlu0 %576
    %578 = vrot.lane.b32.xlu0 %v338, 120
    %v579 = vpop.permute.xlu0 %578
    %v580 = vsel %vm415, %v577, 0
    %v582 = vsel %vm415, %v579, 0
    %584 = vmatprep.subr.mxu0 0.0
    %585 = vmatpush1.xpose.msra.mxu0 %v582
    %586 = vmatprep.subr.mxu0 0.0
    %587 = vmatpush1.xpose.msra.mxu0 0.0
    %588 = vmatprep.subr.mxu0 0.0
    %589 = vmatpush1.xpose.msra.mxu0 0.0
    %590 = vmatprep.subr.mxu0 0.0
    %591 = vmatpush1.xpose.msra.mxu0 0.0
    %592 = vmatprep.subr.mxu0 0.0
    %593 = vmatpush1.xpose.msra.mxu0 0.0
    %594 = vmatprep.subr.mxu0 0.0
    %595 = vmatpush1.xpose.msra.mxu0 0.0
    %596 = vmatprep.subr.mxu0 0.0
    %597 = vmatpush1.xpose.msra.mxu0 0.0
    %598 = vmatprep.subr.mxu0 0.0
    %599 = vmatpush1.xpose.msra.mxu0 0.0
    %600 = vmatprep.subr.mxu0 0.0
    %601 = vmatpush1.xpose.msra.mxu0 0.0
    %602 = vmatprep.subr.mxu0 0.0
    %603 = vmatpush1.xpose.msra.mxu0 0.0
    %604 = vmatprep.subr.mxu0 0.0
    %605 = vmatpush1.xpose.msra.mxu0 0.0
    %606 = vmatprep.subr.mxu0 0.0
    %607 = vmatpush1.xpose.msra.mxu0 0.0
    %608 = vmatprep.subr.mxu0 0.0
    %609 = vmatpush1.xpose.msra.mxu0 0.0
    %610 = vmatprep.subr.mxu0 0.0
    %611 = vmatpush1.xpose.msra.mxu0 0.0
    %612 = vmatprep.subr.mxu0 0.0
    %613 = vmatpush1.xpose.msra.mxu0 0.0
    %614 = vmatprep.subr.mxu0 0.0
    %615 = vmatpush1.xpose.msra.mxu0 0.0
    %616 = vmatprep.subr.mxu0 0.0
    %617 = vmatpush1.xpose.msra.mxu0 0.0
    %618 = vmatprep.subr.mxu0 0.0
    %619 = vmatpush1.xpose.msra.mxu0 0.0
    %620 = vmatprep.subr.mxu0 0.0
    %621 = vmatpush1.xpose.msra.mxu0 0.0
    %622 = vmatprep.subr.mxu0 0.0
    %623 = vmatpush1.xpose.msra.mxu0 0.0
    %624 = vmatprep.subr.mxu0 0.0
    %625 = vmatpush1.xpose.msra.mxu0 0.0
    %626 = vmatprep.subr.mxu0 0.0
    %627 = vmatpush1.xpose.msra.mxu0 0.0
    %628 = vmatprep.subr.mxu0 0.0
    %629 = vmatpush1.xpose.msra.mxu0 0.0
    %630 = vmatprep.subr.mxu0 0.0
    %631 = vmatpush1.xpose.msra.mxu0 0.0
    %632 = vmatprep.subr.mxu0 0.0
    %633 = vmatpush1.xpose.msra.mxu0 0.0
    %634 = vmatprep.subr.mxu0 0.0
    %635 = vmatpush1.xpose.msra.mxu0 0.0
    %636 = vmatprep.subr.mxu0 0.0
    %637 = vmatpush1.xpose.msra.mxu0 0.0
    %638 = vmatprep.subr.mxu0 0.0
    %639 = vmatpush1.xpose.msra.mxu0 0.0
    %640 = vmatprep.subr.mxu0 0.0
    %641 = vmatpush1.xpose.msra.mxu0 0.0
    %642 = vmatprep.subr.mxu0 0.0
    %643 = vmatpush1.xpose.msra.mxu0 0.0
    %644 = vmatprep.subr.mxu0 0.0
    %645 = vmatpush1.xpose.msra.mxu0 0.0
    %646 = vmatprep.subr.mxu0 0.0
    %647 = vmatpush1.xpose.msra.mxu0 0.0
    %648 = vmatprep.mubr.f32.mxu0 0.0
    %649 = vmatmul.mubr.f32.gmra.mrb[0].mxu0 %v580
    %v650 = vpop.f32.mrb[0].mxu0
    %v651 = vadd.f32 0.0, %v650
    %v652 = vpop.f32.mrb[0].mxu0
    %653 = vdwg.mxu0
    %v654 = vmax.f32 %v651, 0.0
    %v655 = vsub.f32 %v651, %v654
    %v656 = vmul.f32 %v655, 1.442695
    %v657 = vpow.pop %v656
    %v658 = vsub.f32 0.0, %v654
    %v659 = vmul.f32 %v658, 1.442695
    %v660 = vpow.pop %v659
    %v661 = vadd.f32 %v660, %v657
    %v662 = vrcp.pop %v661
    %v663 = vmul.f32 %v85, %v662
    %v664 = vmul.f32 %v657, %v663
    %666 = vrot.lane.b32.xlu0 %v412, 120
    %v667 = vpop.permute.xlu0 %666
    %v670 = vsel %vm415, %v664, 0
    %672 = vmatprep.subr.mxu0 0.0
    %673 = vmatpush1.msra.mxu0 %v667
    %674 = vmatprep.subr.mxu0 0.0
    %675 = vmatpush1.msra.mxu0 0.0
    %676 = vmatprep.subr.mxu0 0.0
    %677 = vmatpush1.msra.mxu0 0.0
    %678 = vmatprep.subr.mxu0 0.0
    %679 = vmatpush1.msra.mxu0 0.0
    %680 = vmatprep.subr.mxu0 0.0
    %681 = vmatpush1.msra.mxu0 0.0
    %682 = vmatprep.subr.mxu0 0.0
    %683 = vmatpush1.msra.mxu0 0.0
    %684 = vmatprep.subr.mxu0 0.0
    %685 = vmatpush1.msra.mxu0 0.0
    %686 = vmatprep.subr.mxu0 0.0
    %687 = vmatpush1.msra.mxu0 0.0
    %688 = vmatprep.subr.mxu0 0.0
    %689 = vmatpush1.msra.mxu0 0.0
    %690 = vmatprep.subr.mxu0 0.0
    %691 = vmatpush1.msra.mxu0 0.0
    %692 = vmatprep.subr.mxu0 0.0
    %693 = vmatpush1.msra.mxu0 0.0
    %694 = vmatprep.subr.mxu0 0.0
    %695 = vmatpush1.msra.mxu0 0.0
    %696 = vmatprep.subr.mxu0 0.0
    %697 = vmatpush1.msra.mxu0 0.0
    %698 = vmatprep.subr.mxu0 0.0
    %699 = vmatpush1.msra.mxu0 0.0
    %700 = vmatprep.subr.mxu0 0.0
    %701 = vmatpush1.msra.mxu0 0.0
    %702 = vmatprep.subr.mxu0 0.0
    %703 = vmatpush1.msra.mxu0 0.0
    %704 = vmatprep.subr.mxu0 0.0
    %705 = vmatpush1.msra.mxu0 0.0
    %706 = vmatprep.subr.mxu0 0.0
    %707 = vmatpush1.msra.mxu0 0.0
    %708 = vmatprep.subr.mxu0 0.0
    %709 = vmatpush1.msra.mxu0 0.0
    %710 = vmatprep.subr.mxu0 0.0
    %711 = vmatpush1.msra.mxu0 0.0
    %712 = vmatprep.subr.mxu0 0.0
    %713 = vmatpush1.msra.mxu0 0.0
    %714 = vmatprep.subr.mxu0 0.0
    %715 = vmatpush1.msra.mxu0 0.0
    %716 = vmatprep.subr.mxu0 0.0
    %717 = vmatpush1.msra.mxu0 0.0
    %718 = vmatprep.subr.mxu0 0.0
    %719 = vmatpush1.msra.mxu0 0.0
    %720 = vmatprep.subr.mxu0 0.0
    %721 = vmatpush1.msra.mxu0 0.0
    %722 = vmatprep.subr.mxu0 0.0
    %723 = vmatpush1.msra.mxu0 0.0
    %724 = vmatprep.subr.mxu0 0.0
    %725 = vmatpush1.msra.mxu0 0.0
    %726 = vmatprep.subr.mxu0 0.0
    %727 = vmatpush1.msra.mxu0 0.0
    %728 = vmatprep.subr.mxu0 0.0
    %729 = vmatpush1.msra.mxu0 0.0
    %730 = vmatprep.subr.mxu0 0.0
    %731 = vmatpush1.msra.mxu0 0.0
    %732 = vmatprep.subr.mxu0 0.0
    %733 = vmatpush1.msra.mxu0 0.0
    %734 = vmatprep.subr.mxu0 0.0
    %735 = vmatpush1.msra.mxu0 0.0
    %736 = vmatprep.mubr.f32.mxu0 0.0
    %737 = vmatmul.mubr.f32.gmra.mrb[0].mxu0 %v670
    %v738 = vpop.f32.mrb[0].mxu0
    %v739 = vadd.f32 0.0, %v738
    %v740 = vpop.f32.mrb[0].mxu0
    %741 = vdwg.mxu0
    %742 = vrot.lane.b32.xlu0 %v266, 112
    %v743 = vpop.permute.xlu0 %742
    %744 = vrot.lane.b32.xlu0 %v338, 112
    %v745 = vpop.permute.xlu0 %744
    %v746 = vsel %vm415, %v743, 0
    %v748 = vsel %vm415, %v745, 0
    %750 = vmatprep.subr.mxu0 0.0
    %751 = vmatpush1.xpose.msra.mxu0 %v748
    %752 = vmatprep.subr.mxu0 0.0
    %753 = vmatpush1.xpose.msra.mxu0 0.0
    %754 = vmatprep.subr.mxu0 0.0
    %755 = vmatpush1.xpose.msra.mxu0 0.0
    %756 = vmatprep.subr.mxu0 0.0
    %757 = vmatpush1.xpose.msra.mxu0 0.0
    %758 = vmatprep.subr.mxu0 0.0
    %759 = vmatpush1.xpose.msra.mxu0 0.0
    %760 = vmatprep.subr.mxu0 0.0
    %761 = vmatpush1.xpose.msra.mxu0 0.0
    %762 = vmatprep.subr.mxu0 0.0
    %763 = vmatpush1.xpose.msra.mxu0 0.0
    %764 = vmatprep.subr.mxu0 0.0
    %765 = vmatpush1.xpose.msra.mxu0 0.0
    %766 = vmatprep.subr.mxu0 0.0
    %767 = vmatpush1.xpose.msra.mxu0 0.0
    %768 = vmatprep.subr.mxu0 0.0
    %769 = vmatpush1.xpose.msra.mxu0 0.0
    %770 = vmatprep.subr.mxu0 0.0
    %771 = vmatpush1.xpose.msra.mxu0 0.0
    %772 = vmatprep.subr.mxu0 0.0
    %773 = vmatpush1.xpose.msra.mxu0 0.0
    %774 = vmatprep.subr.mxu0 0.0
    %775 = vmatpush1.xpose.msra.mxu0 0.0
    %776 = vmatprep.subr.mxu0 0.0
    %777 = vmatpush1.xpose.msra.mxu0 0.0
    %778 = vmatprep.subr.mxu0 0.0
    %779 = vmatpush1.xpose.msra.mxu0 0.0
    %780 = vmatprep.subr.mxu0 0.0
    %781 = vmatpush1.xpose.msra.mxu0 0.0
    %782 = vmatprep.subr.mxu0 0.0
    %783 = vmatpush1.xpose.msra.mxu0 0.0
    %784 = vmatprep.subr.mxu0 0.0
    %785 = vmatpush1.xpose.msra.mxu0 0.0
    %786 = vmatprep.subr.mxu0 0.0
    %787 = vmatpush1.xpose.msra.mxu0 0.0
    %788 = vmatprep.subr.mxu0 0.0
    %789 = vmatpush1.xpose.msra.mxu0 0.0
    %790 = vmatprep.subr.mxu0 0.0
    %791 = vmatpush1.xpose.msra.mxu0 0.0
    %792 = vmatprep.subr.mxu0 0.0
    %793 = vmatpush1.xpose.msra.mxu0 0.0
    %794 = vmatprep.subr.mxu0 0.0
    %795 = vmatpush1.xpose.msra.mxu0 0.0
    %796 = vmatprep.subr.mxu0 0.0
    %797 = vmatpush1.xpose.msra.mxu0 0.0
    %798 = vmatprep.subr.mxu0 0.0
    %799 = vmatpush1.xpose.msra.mxu0 0.0
    %800 = vmatprep.subr.mxu0 0.0
    %801 = vmatpush1.xpose.msra.mxu0 0.0
    %802 = vmatprep.subr.mxu0 0.0
    %803 = vmatpush1.xpose.msra.mxu0 0.0
    %804 = vmatprep.subr.mxu0 0.0
    %805 = vmatpush1.xpose.msra.mxu0 0.0
    %806 = vmatprep.subr.mxu0 0.0
    %807 = vmatpush1.xpose.msra.mxu0 0.0
    %808 = vmatprep.subr.mxu0 0.0
    %809 = vmatpush1.xpose.msra.mxu0 0.0
    %810 = vmatprep.subr.mxu0 0.0
    %811 = vmatpush1.xpose.msra.mxu0 0.0
    %812 = vmatprep.subr.mxu0 0.0
    %813 = vmatpush1.xpose.msra.mxu0 0.0
    %814 = vmatprep.mubr.f32.mxu0 0.0
    %815 = vmatmul.mubr.f32.gmra.mrb[0].mxu0 %v746
    %v816 = vpop.f32.mrb[0].mxu0
    %v817 = vadd.f32 0.0, %v816
    %v818 = vpop.f32.mrb[0].mxu0
    %819 = vdwg.mxu0
    %v820 = vmax.f32 %v817, 0.0
    %v821 = vsub.f32 %v817, %v820
    %v822 = vmul.f32 %v821, 1.442695
    %v823 = vpow.pop %v822
    %v824 = vsub.f32 0.0, %v820
    %v825 = vmul.f32 %v824, 1.442695
    %v826 = vpow.pop %v825
    %v827 = vadd.f32 %v826, %v823
    %v828 = vrcp.pop %v827
    %v829 = vmul.f32 %v85, %v828
    %v830 = vmul.f32 %v823, %v829
    %831 = vrot.lane.b32.xlu0 %v412, 112
    %v832 = vpop.permute.xlu0 %831
    %v835 = vsel %vm415, %v830, 0
    %837 = vmatprep.subr.mxu0 0.0
    %838 = vmatpush1.msra.mxu0 %v832
    %839 = vmatprep.subr.mxu0 0.0
    %840 = vmatpush1.msra.mxu0 0.0
    %841 = vmatprep.subr.mxu0 0.0
    %842 = vmatpush1.msra.mxu0 0.0
    %843 = vmatprep.subr.mxu0 0.0
    %844 = vmatpush1.msra.mxu0 0.0
    %845 = vmatprep.subr.mxu0 0.0
    %846 = vmatpush1.msra.mxu0 0.0
    %847 = vmatprep.subr.mxu0 0.0
    %848 = vmatpush1.msra.mxu0 0.0
    %849 = vmatprep.subr.mxu0 0.0
    %850 = vmatpush1.msra.mxu0 0.0
    %851 = vmatprep.subr.mxu0 0.0
    %852 = vmatpush1.msra.mxu0 0.0
    %853 = vmatprep.subr.mxu0 0.0
    %854 = vmatpush1.msra.mxu0 0.0
    %855 = vmatprep.subr.mxu0 0.0
    %856 = vmatpush1.msra.mxu0 0.0
    %857 = vmatprep.subr.mxu0 0.0
    %858 = vmatpush1.msra.mxu0 0.0
    %859 = vmatprep.subr.mxu0 0.0
    %860 = vmatpush1.msra.mxu0 0.0
    %861 = vmatprep.subr.mxu0 0.0
    %862 = vmatpush1.msra.mxu0 0.0
    %863 = vmatprep.subr.mxu0 0.0
    %864 = vmatpush1.msra.mxu0 0.0
    %865 = vmatprep.subr.mxu0 0.0
    %866 = vmatpush1.msra.mxu0 0.0
    %867 = vmatprep.subr.mxu0 0.0
    %868 = vmatpush1.msra.mxu0 0.0
    %869 = vmatprep.subr.mxu0 0.0
    %870 = vmatpush1.msra.mxu0 0.0
    %871 = vmatprep.subr.mxu0 0.0
    %872 = vmatpush1.msra.mxu0 0.0
    %873 = vmatprep.subr.mxu0 0.0
    %874 = vmatpush1.msra.mxu0 0.0
    %875 = vmatprep.subr.mxu0 0.0
    %876 = vmatpush1.msra.mxu0 0.0
    %877 = vmatprep.subr.mxu0 0.0
    %878 = vmatpush1.msra.mxu0 0.0
    %879 = vmatprep.subr.mxu0 0.0
    %880 = vmatpush1.msra.mxu0 0.0
    %881 = vmatprep.subr.mxu0 0.0
    %882 = vmatpush1.msra.mxu0 0.0
    %883 = vmatprep.subr.mxu0 0.0
    %884 = vmatpush1.msra.mxu0 0.0
    %885 = vmatprep.subr.mxu0 0.0
    %886 = vmatpush1.msra.mxu0 0.0
    %887 = vmatprep.subr.mxu0 0.0
    %888 = vmatpush1.msra.mxu0 0.0
    %889 = vmatprep.subr.mxu0 0.0
    %890 = vmatpush1.msra.mxu0 0.0
    %891 = vmatprep.subr.mxu0 0.0
    %892 = vmatpush1.msra.mxu0 0.0
    %893 = vmatprep.subr.mxu0 0.0
    %894 = vmatpush1.msra.mxu0 0.0
    %895 = vmatprep.subr.mxu0 0.0
    %896 = vmatpush1.msra.mxu0 0.0
    %897 = vmatprep.subr.mxu0 0.0
    %898 = vmatpush1.msra.mxu0 0.0
    %899 = vmatprep.subr.mxu0 0.0
    %900 = vmatpush1.msra.mxu0 0.0
    %901 = vmatprep.mubr.f32.mxu0 0.0
    %902 = vmatmul.mubr.f32.gmra.mrb[0].mxu0 %v835
    %v903 = vpop.f32.mrb[0].mxu0
    %v904 = vadd.f32 0.0, %v903
    %v905 = vpop.f32.mrb[0].mxu0
    %906 = vdwg.mxu0
    %907 = vrot.lane.b32.xlu0 %v266, 104
    %v908 = vpop.permute.xlu0 %907
    %909 = vrot.lane.b32.xlu0 %v338, 104
    %v910 = vpop.permute.xlu0 %909
    %v911 = vsel %vm415, %v908, 0
    %v913 = vsel %vm415, %v910, 0
    %915 = vmatprep.subr.mxu0 0.0
    %916 = vmatpush1.xpose.msra.mxu0 %v913
    %917 = vmatprep.subr.mxu0 0.0
    %918 = vmatpush1.xpose.msra.mxu0 0.0
    %919 = vmatprep.subr.mxu0 0.0
    %920 = vmatpush1.xpose.msra.mxu0 0.0
    %921 = vmatprep.subr.mxu0 0.0
    %922 = vmatpush1.xpose.msra.mxu0 0.0
    %923 = vmatprep.subr.mxu0 0.0
    %924 = vmatpush1.xpose.msra.mxu0 0.0
    %925 = vmatprep.subr.mxu0 0.0
    %926 = vmatpush1.xpose.msra.mxu0 0.0
    %927 = vmatprep.subr.mxu0 0.0
    %928 = vmatpush1.xpose.msra.mxu0 0.0
    %929 = vmatprep.subr.mxu0 0.0
    %930 = vmatpush1.xpose.msra.mxu0 0.0
    %931 = vmatprep.subr.mxu0 0.0
    %932 = vmatpush1.xpose.msra.mxu0 0.0
    %933 = vmatprep.subr.mxu0 0.0
    %934 = vmatpush1.xpose.msra.mxu0 0.0
    %935 = vmatprep.subr.mxu0 0.0
    %936 = vmatpush1.xpose.msra.mxu0 0.0
    %937 = vmatprep.subr.mxu0 0.0
    %938 = vmatpush1.xpose.msra.mxu0 0.0
    %939 = vmatprep.subr.mxu0 0.0
    %940 = vmatpush1.xpose.msra.mxu0 0.0
    %941 = vmatprep.subr.mxu0 0.0
    %942 = vmatpush1.xpose.msra.mxu0 0.0
    %943 = vmatprep.subr.mxu0 0.0
    %944 = vmatpush1.xpose.msra.mxu0 0.0
    %945 = vmatprep.subr.mxu0 0.0
    %946 = vmatpush1.xpose.msra.mxu0 0.0
    %947 = vmatprep.subr.mxu0 0.0
    %948 = vmatpush1.xpose.msra.mxu0 0.0
    %949 = vmatprep.subr.mxu0 0.0
    %950 = vmatpush1.xpose.msra.mxu0 0.0
    %951 = vmatprep.subr.mxu0 0.0
    %952 = vmatpush1.xpose.msra.mxu0 0.0
    %953 = vmatprep.subr.mxu0 0.0
    %954 = vmatpush1.xpose.msra.mxu0 0.0
    %955 = vmatprep.subr.mxu0 0.0
    %956 = vmatpush1.xpose.msra.mxu0 0.0
    %957 = vmatprep.subr.mxu0 0.0
    %958 = vmatpush1.xpose.msra.mxu0 0.0
    %959 = vmatprep.subr.mxu0 0.0
    %960 = vmatpush1.xpose.msra.mxu0 0.0
    %961 = vmatprep.subr.mxu0 0.0
    %962 = vmatpush1.xpose.msra.mxu0 0.0
    %963 = vmatprep.subr.mxu0 0.0
    %964 = vmatpush1.xpose.msra.mxu0 0.0
    %965 = vmatprep.subr.mxu0 0.0
    %966 = vmatpush1.xpose.msra.mxu0 0.0
    %967 = vmatprep.subr.mxu0 0.0
    %968 = vmatpush1.xpose.msra.mxu0 0.0
    %969 = vmatprep.subr.mxu0 0.0
    %970 = vmatpush1.xpose.msra.mxu0 0.0
    %971 = vmatprep.subr.mxu0 0.0
    %972 = vmatpush1.xpose.msra.mxu0 0.0
    %973 = vmatprep.subr.mxu0 0.0
    %974 = vmatpush1.xpose.msra.mxu0 0.0
    %975 = vmatprep.subr.mxu0 0.0
    %976 = vmatpush1.xpose.msra.mxu0 0.0
    %977 = vmatprep.subr.mxu0 0.0
    %978 = vmatpush1.xpose.msra.mxu0 0.0
    %979 = vmatprep.mubr.f32.mxu0 0.0
    %980 = vmatmul.mubr.f32.gmra.mrb[0].mxu0 %v911
    %v981 = vpop.f32.mrb[0].mxu0
    %v982 = vadd.f32 0.0, %v981
    %v983 = vpop.f32.mrb[0].mxu0
    %984 = vdwg.mxu0
    %v985 = vmax.f32 %v982, 0.0
    %v986 = vsub.f32 %v982, %v985
    %v987 = vmul.f32 %v986, 1.442695
    %v988 = vpow.pop %v987
    %v989 = vsub.f32 0.0, %v985
    %v990 = vmul.f32 %v989, 1.442695
    %v991 = vpow.pop %v990
    %v992 = vadd.f32 %v991, %v988
    %v993 = vrcp.pop %v992
    %v994 = vmul.f32 %v85, %v993
    %v995 = vmul.f32 %v988, %v994
    %996 = vrot.lane.b32.xlu0 %v412, 104
    %v997 = vpop.permute.xlu0 %996
    %v1000 = vsel %vm415, %v995, 0
    %1002 = vmatprep.subr.mxu0 0.0
    %1003 = vmatpush1.msra.mxu0 %v997
    %1004 = vmatprep.subr.mxu0 0.0
    %1005 = vmatpush1.msra.mxu0 0.0
    %1006 = vmatprep.subr.mxu0 0.0
    %1007 = vmatpush1.msra.mxu0 0.0
    %1008 = vmatprep.subr.mxu0 0.0
    %1009 = vmatpush1.msra.mxu0 0.0
    %1010 = vmatprep.subr.mxu0 0.0
    %1011 = vmatpush1.msra.mxu0 0.0
    %1012 = vmatprep.subr.mxu0 0.0
    %1013 = vmatpush1.msra.mxu0 0.0
    %1014 = vmatprep.subr.mxu0 0.0
    %1015 = vmatpush1.msra.mxu0 0.0
    %1016 = vmatprep.subr.mxu0 0.0
    %1017 = vmatpush1.msra.mxu0 0.0
    %1018 = vmatprep.subr.mxu0 0.0
    %1019 = vmatpush1.msra.mxu0 0.0
    %1020 = vmatprep.subr.mxu0 0.0
    %1021 = vmatpush1.msra.mxu0 0.0
    %1022 = vmatprep.subr.mxu0 0.0
    %1023 = vmatpush1.msra.mxu0 0.0
    %1024 = vmatprep.subr.mxu0 0.0
    %1025 = vmatpush1.msra.mxu0 0.0
    %1026 = vmatprep.subr.mxu0 0.0
    %1027 = vmatpush1.msra.mxu0 0.0
    %1028 = vmatprep.subr.mxu0 0.0
    %1029 = vmatpush1.msra.mxu0 0.0
    %1030 = vmatprep.subr.mxu0 0.0
    %1031 = vmatpush1.msra.mxu0 0.0
    %1032 = vmatprep.subr.mxu0 0.0
    %1033 = vmatpush1.msra.mxu0 0.0
    %1034 = vmatprep.subr.mxu0 0.0
    %1035 = vmatpush1.msra.mxu0 0.0
    %1036 = vmatprep.subr.mxu0 0.0
    %1037 = vmatpush1.msra.mxu0 0.0
    %1038 = vmatprep.subr.mxu0 0.0
    %1039 = vmatpush1.msra.mxu0 0.0
    %1040 = vmatprep.subr.mxu0 0.0
    %1041 = vmatpush1.msra.mxu0 0.0
    %1042 = vmatprep.subr.mxu0 0.0
    %1043 = vmatpush1.msra.mxu0 0.0
    %1044 = vmatprep.subr.mxu0 0.0
    %1045 = vmatpush1.msra.mxu0 0.0
    %1046 = vmatprep.subr.mxu0 0.0
    %1047 = vmatpush1.msra.mxu0 0.0
    %1048 = vmatprep.subr.mxu0 0.0
    %1049 = vmatpush1.msra.mxu0 0.0
    %1050 = vmatprep.subr.mxu0 0.0
    %1051 = vmatpush1.msra.mxu0 0.0
    %1052 = vmatprep.subr.mxu0 0.0
    %1053 = vmatpush1.msra.mxu0 0.0
    %1054 = vmatprep.subr.mxu0 0.0
    %1055 = vmatpush1.msra.mxu0 0.0
    %1056 = vmatprep.subr.mxu0 0.0
    %1057 = vmatpush1.msra.mxu0 0.0
    %1058 = vmatprep.subr.mxu0 0.0
    %1059 = vmatpush1.msra.mxu0 0.0
    %1060 = vmatprep.subr.mxu0 0.0
    %1061 = vmatpush1.msra.mxu0 0.0
    %1062 = vmatprep.subr.mxu0 0.0
    %1063 = vmatpush1.msra.mxu0 0.0
    %1064 = vmatprep.subr.mxu0 0.0
    %1065 = vmatpush1.msra.mxu0 0.0
    %1066 = vmatprep.mubr.f32.mxu0 0.0
    %1067 = vmatmul.mubr.f32.gmra.mrb[0].mxu0 %v1000
    %v1068 = vpop.f32.mrb[0].mxu0
    %v1069 = vadd.f32 0.0, %v1068
    %v1070 = vpop.f32.mrb[0].mxu0
    %1071 = vdwg.mxu0
    %1073 = vrot.lane.b32.xlu0 %v739, 8
    %v1074 = vpop.permute.xlu0 %1073
    %1077 = vrot.lane.b32.xlu0 %v904, 16
    %v1078 = vpop.permute.xlu0 %1077
    %1081 = vrot.lane.b32.xlu0 %v1069, 24
    %v1082 = vpop.permute.xlu0 %1081
    %v1084 = vsel %vm415, %v573, %v1074
    %v1085 = vsel %vm94, %v1084, %v1078
    %vm1086 = vcmask 195584
    %v1087 = vsel %vm1086, %v1085, %v1082
    %v1088 = vmax.f32 %v1087, 0.0
    %v1089 = vlaneseq
    %v1090 = vshrl.u32 %v1089, 7
    %v1091 = vsub.s32 0, %v1090
    %v1092 = vrot.slane %v186, %v1091
    %v1093 = vmul.f32 %v1088, %v1092
    %v1094 = vlaneseq
    %v1095 = vshrl.u32 %v1094, 7
    %v1096 = vsub.s32 0, %v1095
    %v1097 = vrot.slane %v187, %v1096
    %v1098 = vadd.f32 %v1093, %v1097
    %1099 = vst.msk [vmem:[#allocation11] sm:$0xff] %vm192, %v1098
    %s1100 = scalar_lea.vmem [#allocation8], 96
    %v1101 = vld [vmem:[%s1100] sm:$0xff]
    %v1102 = vld [vmem:[%s1100 + $0x8] sm:$0xff]
    %v1103 = vld [vmem:[%s1100 + $0x10] sm:$0xff]
    %v1104 = vld [vmem:[%s1100 + $0x18] sm:$0xff]
    %s1105 = scalar_lea.vmem [#allocation8], 128
    %v1106 = vld [vmem:[%s1105] sm:$0xff]
    %v1107 = vld [vmem:[%s1105 + $0x8] sm:$0xff]
    %v1108 = vld [vmem:[%s1105 + $0x10] sm:$0xff]
    %v1109 = vld [vmem:[%s1105 + $0x18] sm:$0xff]
    %s1110 = scalar_lea.vmem [#allocation8], 160
    %v1111 = vld [vmem:[%s1110] sm:$0xff]
    %v1112 = vld [vmem:[%s1110 + $0x8] sm:$0xff]
    %v1113 = vld [vmem:[%s1110 + $0x10] sm:$0xff]
    %v1114 = vld [vmem:[%s1110 + $0x18] sm:$0xff]
    %v1115 = vld [vmem:[#allocation10 + $0x6] sm:$0x1]
    %v1116 = vld [vmem:[#allocation10 + $0x7] sm:$0x1]
    %v1117 = vld [vmem:[#allocation10 + $0x8] sm:$0x1]
    %v1118 = vld [vmem:[#allocation10 + $0x9] sm:$0x1]
    %v1119 = vld [vmem:[#allocation10 + $0xa] sm:$0x1]
    %v1120 = vlaneseq
    %v1121 = vshrl.u32 %v1120, 7
    %v1122 = vsub.s32 0, %v1121
    %v1123 = vrot.slane %v1115, %v1122
    %v1125 = vsel %vm192, %v1098, 0
    %1127 = vmatprep.subr.mxu0 0.0
    %1128 = vmatpush1.msra.mxu0 %v1101
    %1129 = vmatprep.subr.mxu0 0.0
    %1130 = vmatpush1.msra.mxu0 %v1102
    %1131 = vmatprep.subr.mxu0 0.0
    %1132 = vmatpush1.msra.mxu0 %v1103
    %1133 = vmatprep.subr.mxu0 0.0
    %1134 = vmatpush1.msra.mxu0 %v1104
    %1135 = vmatprep.subr.mxu0 0.0
    %1136 = vmatpush1.msra.mxu0 0.0
    %1137 = vmatprep.subr.mxu0 0.0
    %1138 = vmatpush1.msra.mxu0 0.0
    %1139 = vmatprep.subr.mxu0 0.0
    %1140 = vmatpush1.msra.mxu0 0.0
    %1141 = vmatprep.subr.mxu0 0.0
    %1142 = vmatpush1.msra.mxu0 0.0
    %1143 = vmatprep.subr.mxu0 0.0
    %1144 = vmatpush1.msra.mxu0 0.0
    %1145 = vmatprep.subr.mxu0 0.0
    %1146 = vmatpush1.msra.mxu0 0.0
    %1147 = vmatprep.subr.mxu0 0.0
    %1148 = vmatpush1.msra.mxu0 0.0
    %1149 = vmatprep.subr.mxu0 0.0
    %1150 = vmatpush1.msra.mxu0 0.0
    %1151 = vmatprep.subr.mxu0 0.0
    %1152 = vmatpush1.msra.mxu0 0.0
    %1153 = vmatprep.subr.mxu0 0.0
    %1154 = vmatpush1.msra.mxu0 0.0
    %1155 = vmatprep.subr.mxu0 0.0
    %1156 = vmatpush1.msra.mxu0 0.0
    %1157 = vmatprep.subr.mxu0 0.0
    %1158 = vmatpush1.msra.mxu0 0.0
    %1159 = vmatprep.subr.mxu0 0.0
    %1160 = vmatpush1.msra.mxu0 0.0
    %1161 = vmatprep.subr.mxu0 0.0
    %1162 = vmatpush1.msra.mxu0 0.0
    %1163 = vmatprep.subr.mxu0 0.0
    %1164 = vmatpush1.msra.mxu0 0.0
    %1165 = vmatprep.subr.mxu0 0.0
    %1166 = vmatpush1.msra.mxu0 0.0
    %1167 = vmatprep.subr.mxu0 0.0
    %1168 = vmatpush1.msra.mxu0 0.0
    %1169 = vmatprep.subr.mxu0 0.0
    %1170 = vmatpush1.msra.mxu0 0.0
    %1171 = vmatprep.subr.mxu0 0.0
    %1172 = vmatpush1.msra.mxu0 0.0
    %1173 = vmatprep.subr.mxu0 0.0
    %1174 = vmatpush1.msra.mxu0 0.0
    %1175 = vmatprep.subr.mxu0 0.0
    %1176 = vmatpush1.msra.mxu0 0.0
    %1177 = vmatprep.subr.mxu0 0.0
    %1178 = vmatpush1.msra.mxu0 0.0
    %1179 = vmatprep.subr.mxu0 0.0
    %1180 = vmatpush1.msra.mxu0 0.0
    %1181 = vmatprep.subr.mxu0 0.0
    %1182 = vmatpush1.msra.mxu0 0.0
    %1183 = vmatprep.subr.mxu0 0.0
    %1184 = vmatpush1.msra.mxu0 0.0
    %1185 = vmatprep.subr.mxu0 0.0
    %1186 = vmatpush1.msra.mxu0 0.0
    %1187 = vmatprep.subr.mxu0 0.0
    %1188 = vmatpush1.msra.mxu0 0.0
    %1189 = vmatprep.subr.mxu0 0.0
    %1190 = vmatpush1.msra.mxu0 0.0
    %1191 = vmatprep.mubr.f32.mxu0 0.0
    %1192 = vmatmul.mubr.f32.gmra.mrb[0].mxu0 %v1125
    %v1193 = vpop.f32.mrb[0].mxu0
    %v1194 = vadd.f32 %v1123, %v1193
    %v1195 = vpop.f32.mrb[0].mxu0
    %1196 = vdwg.mxu0
    %v1197 = vmul.f32 %v1194, 0.35355338
    %v1198 = vlaneseq
    %v1199 = vshrl.u32 %v1198, 7
    %v1200 = vsub.s32 0, %v1199
    %v1201 = vrot.slane %v1116, %v1200
    %1202 = vmatprep.subr.mxu0 0.0
    %1203 = vmatpush1.msra.mxu0 %v1106
    %1204 = vmatprep.subr.mxu0 0.0
    %1205 = vmatpush1.msra.mxu0 %v1107
    %1206 = vmatprep.subr.mxu0 0.0
    %1207 = vmatpush1.msra.mxu0 %v1108
    %1208 = vmatprep.subr.mxu0 0.0
    %1209 = vmatpush1.msra.mxu0 %v1109
    %1210 = vmatprep.subr.mxu0 0.0
    %1211 = vmatpush1.msra.mxu0 0.0
    %1212 = vmatprep.subr.mxu0 0.0
    %1213 = vmatpush1.msra.mxu0 0.0
    %1214 = vmatprep.subr.mxu0 0.0
    %1215 = vmatpush1.msra.mxu0 0.0
    %1216 = vmatprep.subr.mxu0 0.0
    %1217 = vmatpush1.msra.mxu0 0.0
    %1218 = vmatprep.subr.mxu0 0.0
    %1219 = vmatpush1.msra.mxu0 0.0
    %1220 = vmatprep.subr.mxu0 0.0
    %1221 = vmatpush1.msra.mxu0 0.0
    %1222 = vmatprep.subr.mxu0 0.0
    %1223 = vmatpush1.msra.mxu0 0.0
    %1224 = vmatprep.subr.mxu0 0.0
    %1225 = vmatpush1.msra.mxu0 0.0
    %1226 = vmatprep.subr.mxu0 0.0
    %1227 = vmatpush1.msra.mxu0 0.0
    %1228 = vmatprep.subr.mxu0 0.0
    %1229 = vmatpush1.msra.mxu0 0.0
    %1230 = vmatprep.subr.mxu0 0.0
    %1231 = vmatpush1.msra.mxu0 0.0
    %1232 = vmatprep.subr.mxu0 0.0
    %1233 = vmatpush1.msra.mxu0 0.0
    %1234 = vmatprep.subr.mxu0 0.0
    %1235 = vmatpush1.msra.mxu0 0.0
    %1236 = vmatprep.subr.mxu0 0.0
    %1237 = vmatpush1.msra.mxu0 0.0
    %1238 = vmatprep.subr.mxu0 0.0
    %1239 = vmatpush1.msra.mxu0 0.0
    %1240 = vmatprep.subr.mxu0 0.0
    %1241 = vmatpush1.msra.mxu0 0.0
    %1242 = vmatprep.subr.mxu0 0.0
    %1243 = vmatpush1.msra.mxu0 0.0
    %1244 = vmatprep.subr.mxu0 0.0
    %1245 = vmatpush1.msra.mxu0 0.0
    %1246 = vmatprep.subr.mxu0 0.0
    %1247 = vmatpush1.msra.mxu0 0.0
    %1248 = vmatprep.subr.mxu0 0.0
    %1249 = vmatpush1.msra.mxu0 0.0
    %1250 = vmatprep.subr.mxu0 0.0
    %1251 = vmatpush1.msra.mxu0 0.0
    %1252 = vmatprep.subr.mxu0 0.0
    %1253 = vmatpush1.msra.mxu0 0.0
    %1254 = vmatprep.subr.mxu0 0.0
    %1255 = vmatpush1.msra.mxu0 0.0
    %1256 = vmatprep.subr.mxu0 0.0
    %1257 = vmatpush1.msra.mxu0 0.0
    %1258 = vmatprep.subr.mxu0 0.0
    %1259 = vmatpush1.msra.mxu0 0.0
    %1260 = vmatprep.subr.mxu0 0.0
    %1261 = vmatpush1.msra.mxu0 0.0
    %1262 = vmatprep.subr.mxu0 0.0
    %1263 = vmatpush1.msra.mxu0 0.0
    %1264 = vmatprep.subr.mxu0 0.0
    %1265 = vmatpush1.msra.mxu0 0.0
    %1266 = vmatprep.mubr.f32.mxu0 0.0
    %1267 = vmatmul.mubr.f32.gmra.mrb[0].mxu0 %v194
    %v1268 = vpop.f32.mrb[0].mxu0
    %v1269 = vadd.f32 %v1201, %v1268
    %v1270 = vpop.f32.mrb[0].mxu0
    %1271 = vmatprep.mubr.f32.mxu0 0.0
    %1272 = vmatmul.mubr.f32.gmra.mrb[0].mxu0 %v1125
    %v1273 = vpop.f32.mrb[0].mxu0
    %v1274 = vadd.f32 %v1201, %v1273
    %v1275 = vpop.f32.mrb[0].mxu0
    %1276 = vdwg.mxu0
    %v1277 = vlaneseq
    %v1278 = vshrl.u32 %v1277, 7
    %v1279 = vsub.s32 0, %v1278
    %v1280 = vrot.slane %v1117, %v1279
    %1281 = vmatprep.subr.mxu0 0.0
    %1282 = vmatpush1.msra.mxu0 %v1111
    %1283 = vmatprep.subr.mxu0 0.0
    %1284 = vmatpush1.msra.mxu0 %v1112
    %1285 = vmatprep.subr.mxu0 0.0
    %1286 = vmatpush1.msra.mxu0 %v1113
    %1287 = vmatprep.subr.mxu0 0.0
    %1288 = vmatpush1.msra.mxu0 %v1114
    %1289 = vmatprep.subr.mxu0 0.0
    %1290 = vmatpush1.msra.mxu0 0.0
    %1291 = vmatprep.subr.mxu0 0.0
    %1292 = vmatpush1.msra.mxu0 0.0
    %1293 = vmatprep.subr.mxu0 0.0
    %1294 = vmatpush1.msra.mxu0 0.0
    %1295 = vmatprep.subr.mxu0 0.0
    %1296 = vmatpush1.msra.mxu0 0.0
    %1297 = vmatprep.subr.mxu0 0.0
    %1298 = vmatpush1.msra.mxu0 0.0
    %1299 = vmatprep.subr.mxu0 0.0
    %1300 = vmatpush1.msra.mxu0 0.0
    %1301 = vmatprep.subr.mxu0 0.0
    %1302 = vmatpush1.msra.mxu0 0.0
    %1303 = vmatprep.subr.mxu0 0.0
    %1304 = vmatpush1.msra.mxu0 0.0
    %1305 = vmatprep.subr.mxu0 0.0
    %1306 = vmatpush1.msra.mxu0 0.0
    %1307 = vmatprep.subr.mxu0 0.0
    %1308 = vmatpush1.msra.mxu0 0.0
    %1309 = vmatprep.subr.mxu0 0.0
    %1310 = vmatpush1.msra.mxu0 0.0
    %1311 = vmatprep.subr.mxu0 0.0
    %1312 = vmatpush1.msra.mxu0 0.0
    %1313 = vmatprep.subr.mxu0 0.0
    %1314 = vmatpush1.msra.mxu0 0.0
    %1315 = vmatprep.subr.mxu0 0.0
    %1316 = vmatpush1.msra.mxu0 0.0
    %1317 = vmatprep.subr.mxu0 0.0
    %1318 = vmatpush1.msra.mxu0 0.0
    %1319 = vmatprep.subr.mxu0 0.0
    %1320 = vmatpush1.msra.mxu0 0.0
    %1321 = vmatprep.subr.mxu0 0.0
    %1322 = vmatpush1.msra.mxu0 0.0
    %1323 = vmatprep.subr.mxu0 0.0
    %1324 = vmatpush1.msra.mxu0 0.0
    %1325 = vmatprep.subr.mxu0 0.0
    %1326 = vmatpush1.msra.mxu0 0.0
    %1327 = vmatprep.subr.mxu0 0.0
    %1328 = vmatpush1.msra.mxu0 0.0
    %1329 = vmatprep.subr.mxu0 0.0
    %1330 = vmatpush1.msra.mxu0 0.0
    %1331 = vmatprep.subr.mxu0 0.0
    %1332 = vmatpush1.msra.mxu0 0.0
    %1333 = vmatprep.subr.mxu0 0.0
    %1334 = vmatpush1.msra.mxu0 0.0
    %1335 = vmatprep.subr.mxu0 0.0
    %1336 = vmatpush1.msra.mxu0 0.0
    %1337 = vmatprep.subr.mxu0 0.0
    %1338 = vmatpush1.msra.mxu0 0.0
    %1339 = vmatprep.subr.mxu0 0.0
    %1340 = vmatpush1.msra.mxu0 0.0
    %1341 = vmatprep.subr.mxu0 0.0
    %1342 = vmatpush1.msra.mxu0 0.0
    %1343 = vmatprep.subr.mxu0 0.0
    %1344 = vmatpush1.msra.mxu0 0.0
    %1345 = vmatprep.mubr.f32.mxu0 0.0
    %1346 = vmatmul.mubr.f32.gmra.mrb[0].mxu0 %v194
    %v1347 = vpop.f32.mrb[0].mxu0
    %v1348 = vadd.f32 %v1280, %v1347
    %v1349 = vpop.f32.mrb[0].mxu0
    %1350 = vmatprep.mubr.f32.mxu0 0.0
    %1351 = vmatmul.mubr.f32.gmra.mrb[0].mxu0 %v1125
    %v1352 = vpop.f32.mrb[0].mxu0
    %v1353 = vadd.f32 %v1280, %v1352
    %v1354 = vpop.f32.mrb[0].mxu0
    %1355 = vdwg.mxu0
    %v1357 = vsel %vm415, %v1197, 0
    %v1360 = vsel %vm415, %v1269, 0
    %v1363 = vsel %vm415, %v1274, 0
    %1365 = vmatprep.subr.mxu0 0.0
    %1366 = vmatpush1.xpose.msra.mxu0 %v1360
    %1367 = vmatprep.subr.mxu0 0.0
    %1368 = vmatpush1.xpose.msra.mxu0 %v1363
    %1369 = vmatprep.subr.mxu0 0.0
    %1370 = vmatpush1.xpose.msra.mxu0 0.0
    %1371 = vmatprep.subr.mxu0 0.0
    %1372 = vmatpush1.xpose.msra.mxu0 0.0
    %1373 = vmatprep.subr.mxu0 0.0
    %1374 = vmatpush1.xpose.msra.mxu0 0.0
    %1375 = vmatprep.subr.mxu0 0.0
    %1376 = vmatpush1.xpose.msra.mxu0 0.0
    %1377 = vmatprep.subr.mxu0 0.0
    %1378 = vmatpush1.xpose.msra.mxu0 0.0
    %1379 = vmatprep.subr.mxu0 0.0
    %1380 = vmatpush1.xpose.msra.mxu0 0.0
    %1381 = vmatprep.subr.mxu0 0.0
    %1382 = vmatpush1.xpose.msra.mxu0 0.0
    %1383 = vmatprep.subr.mxu0 0.0
    %1384 = vmatpush1.xpose.msra.mxu0 0.0
    %1385 = vmatprep.subr.mxu0 0.0
    %1386 = vmatpush1.xpose.msra.mxu0 0.0
    %1387 = vmatprep.subr.mxu0 0.0
    %1388 = vmatpush1.xpose.msra.mxu0 0.0
    %1389 = vmatprep.subr.mxu0 0.0
    %1390 = vmatpush1.xpose.msra.mxu0 0.0
    %1391 = vmatprep.subr.mxu0 0.0
    %1392 = vmatpush1.xpose.msra.mxu0 0.0
    %1393 = vmatprep.subr.mxu0 0.0
    %1394 = vmatpush1.xpose.msra.mxu0 0.0
    %1395 = vmatprep.subr.mxu0 0.0
    %1396 = vmatpush1.xpose.msra.mxu0 0.0
    %1397 = vmatprep.subr.mxu0 0.0
    %1398 = vmatpush1.xpose.msra.mxu0 0.0
    %1399 = vmatprep.subr.mxu0 0.0
    %1400 = vmatpush1.xpose.msra.mxu0 0.0
    %1401 = vmatprep.subr.mxu0 0.0
    %1402 = vmatpush1.xpose.msra.mxu0 0.0
    %1403 = vmatprep.subr.mxu0 0.0
    %1404 = vmatpush1.xpose.msra.mxu0 0.0
    %1405 = vmatprep.subr.mxu0 0.0
    %1406 = vmatpush1.xpose.msra.mxu0 0.0
    %1407 = vmatprep.subr.mxu0 0.0
    %1408 = vmatpush1.xpose.msra.mxu0 0.0
    %1409 = vmatprep.subr.mxu0 0.0
    %1410 = vmatpush1.xpose.msra.mxu0 0.0
    %1411 = vmatprep.subr.mxu0 0.0
    %1412 = vmatpush1.xpose.msra.mxu0 0.0
    %1413 = vmatprep.subr.mxu0 0.0
    %1414 = vmatpush1.xpose.msra.mxu0 0.0
    %1415 = vmatprep.subr.mxu0 0.0
    %1416 = vmatpush1.xpose.msra.mxu0 0.0
    %1417 = vmatprep.subr.mxu0 0.0
    %1418 = vmatpush1.xpose.msra.mxu0 0.0
    %1419 = vmatprep.subr.mxu0 0.0
    %1420 = vmatpush1.xpose.msra.mxu0 0.0
    %1421 = vmatprep.subr.mxu0 0.0
    %1422 = vmatpush1.xpose.msra.mxu0 0.0
    %1423 = vmatprep.subr.mxu0 0.0
    %1424 = vmatpush1.xpose.msra.mxu0 0.0
    %1425 = vmatprep.subr.mxu0 0.0
    %1426 = vmatpush1.xpose.msra.mxu0 0.0
    %1427 = vmatprep.subr.mxu0 0.0
    %1428 = vmatpush1.xpose.msra.mxu0 0.0
    %1429 = vmatprep.mubr.f32.mxu0 0.0
    %1430 = vmatmul.mubr.f32.gmra.mrb[0].mxu0 %v1357
    %v1431 = vpop.f32.mrb[0].mxu0
    %v1432 = vadd.f32 0.0, %v1431
    %v1433 = vpop.f32.mrb[0].mxu0
    %1434 = vdwg.mxu0
    %1436 = vrot.lane.b32.xlu0 %v1432, 120
    %v1437 = vpop.permute.xlu0 %1436
    %v1439 = vmax.f32 %v1432, %v1437
    %v1440 = vmax.f32 %v1439, 0.0
    %v1441 = vsub.f32 %v1432, %v1440
    %v1442 = vmul.f32 %v1441, 1.442695
    %v1443 = vpow.pop %v1442
    %1445 = vrot.lane.b32.xlu0 %v1440, 8
    %v1446 = vpop.permute.xlu0 %1445
    %v1448 = vsub.f32 %v1432, %v1446
    %v1449 = vmul.f32 %v1448, 1.442695
    %v1450 = vpow.pop %v1449
    %v1451 = vsub.f32 0.0, %v1440
    %v1452 = vmul.f32 %v1451, 1.442695
    %v1453 = vpow.pop %v1452
    %v1454 = vadd.f32 %v1453, %v1443
    %1456 = vrot.lane.b32.xlu0 %v1450, 120
    %v1457 = vpop.permute.xlu0 %1456
    %v1459 = vadd.f32 %v1454, %v1457
    %v1460 = vrcp.pop %v1459
    %v1461 = vmul.f32 %v85, %v1460
    %v1462 = vmul.f32 %v1443, %v1461
    %1464 = vrot.lane.b32.xlu0 %v1461, 8
    %v1465 = vpop.permute.xlu0 %1464
    %v1467 = vmul.f32 %v1450, %v1465
    %1469 = vrot.lane.b32.xlu0 %v1467, 120
    %v1470 = vpop.permute.xlu0 %1469
    %v1471 = vsel %vm415, %v1470, 0
    %1473 = vmatprep.subr.mxu0 0.0
    %1474 = vmatpush1.msra.mxu0 %v1353
    %1475 = vmatprep.subr.mxu0 0.0
    %1476 = vmatpush1.msra.mxu0 0.0
    %1477 = vmatprep.subr.mxu0 0.0
    %1478 = vmatpush1.msra.mxu0 0.0
    %1479 = vmatprep.subr.mxu0 0.0
    %1480 = vmatpush1.msra.mxu0 0.0
    %1481 = vmatprep.subr.mxu0 0.0
    %1482 = vmatpush1.msra.mxu0 0.0
    %1483 = vmatprep.subr.mxu0 0.0
    %1484 = vmatpush1.msra.mxu0 0.0
    %1485 = vmatprep.subr.mxu0 0.0
    %1486 = vmatpush1.msra.mxu0 0.0
    %1487 = vmatprep.subr.mxu0 0.0
    %1488 = vmatpush1.msra.mxu0 0.0
    %1489 = vmatprep.subr.mxu0 0.0
    %1490 = vmatpush1.msra.mxu0 0.0
    %1491 = vmatprep.subr.mxu0 0.0
    %1492 = vmatpush1.msra.mxu0 0.0
    %1493 = vmatprep.subr.mxu0 0.0
    %1494 = vmatpush1.msra.mxu0 0.0
    %1495 = vmatprep.subr.mxu0 0.0
    %1496 = vmatpush1.msra.mxu0 0.0
    %1497 = vmatprep.subr.mxu0 0.0
    %1498 = vmatpush1.msra.mxu0 0.0
    %1499 = vmatprep.subr.mxu0 0.0
    %1500 = vmatpush1.msra.mxu0 0.0
    %1501 = vmatprep.subr.mxu0 0.0
    %1502 = vmatpush1.msra.mxu0 0.0
    %1503 = vmatprep.subr.mxu0 0.0
    %1504 = vmatpush1.msra.mxu0 0.0
    %1505 = vmatprep.subr.mxu0 0.0
    %1506 = vmatpush1.msra.mxu0 0.0
    %1507 = vmatprep.subr.mxu0 0.0
    %1508 = vmatpush1.msra.mxu0 0.0
    %1509 = vmatprep.subr.mxu0 0.0
    %1510 = vmatpush1.msra.mxu0 0.0
    %1511 = vmatprep.subr.mxu0 0.0
    %1512 = vmatpush1.msra.mxu0 0.0
    %1513 = vmatprep.subr.mxu0 0.0
    %1514 = vmatpush1.msra.mxu0 0.0
    %1515 = vmatprep.subr.mxu0 0.0
    %1516 = vmatpush1.msra.mxu0 0.0
    %1517 = vmatprep.subr.mxu0 0.0
    %1518 = vmatpush1.msra.mxu0 0.0
    %1519 = vmatprep.subr.mxu0 0.0
    %1520 = vmatpush1.msra.mxu0 0.0
    %1521 = vmatprep.subr.mxu0 0.0
    %1522 = vmatpush1.msra.mxu0 0.0
    %1523 = vmatprep.subr.mxu0 0.0
    %1524 = vmatpush1.msra.mxu0 0.0
    %1525 = vmatprep.subr.mxu0 0.0
    %1526 = vmatpush1.msra.mxu0 0.0
    %1527 = vmatprep.subr.mxu0 0.0
    %1528 = vmatpush1.msra.mxu0 0.0
    %1529 = vmatprep.subr.mxu0 0.0
    %1530 = vmatpush1.msra.mxu0 0.0
    %1531 = vmatprep.subr.mxu0 0.0
    %1532 = vmatpush1.msra.mxu0 0.0
    %1533 = vmatprep.subr.mxu0 0.0
    %1534 = vmatpush1.msra.mxu0 0.0
    %1535 = vmatprep.subr.mxu0 0.0
    %1536 = vmatpush1.msra.mxu0 0.0
    %1537 = vmatprep.mubr.f32.mxu0 0.0
    %1538 = vmatmul.mubr.f32.gmra.mrb[0].mxu0 %v1471
    %v1539 = vpop.f32.mrb[0].mxu0
    %v1540 = vadd.f32 0.0, %v1539
    %v1541 = vpop.f32.mrb[0].mxu0
    %1542 = vdwg.mxu0
    %v1544 = vsel %vm415, %v1462, 0
    %1546 = vmatprep.subr.mxu0 0.0
    %1547 = vmatpush1.msra.mxu0 %v1348
    %1548 = vmatprep.subr.mxu0 0.0
    %1549 = vmatpush1.msra.mxu0 0.0
    %1550 = vmatprep.subr.mxu0 0.0
    %1551 = vmatpush1.msra.mxu0 0.0
    %1552 = vmatprep.subr.mxu0 0.0
    %1553 = vmatpush1.msra.mxu0 0.0
    %1554 = vmatprep.subr.mxu0 0.0
    %1555 = vmatpush1.msra.mxu0 0.0
    %1556 = vmatprep.subr.mxu0 0.0
    %1557 = vmatpush1.msra.mxu0 0.0
    %1558 = vmatprep.subr.mxu0 0.0
    %1559 = vmatpush1.msra.mxu0 0.0
    %1560 = vmatprep.subr.mxu0 0.0
    %1561 = vmatpush1.msra.mxu0 0.0
    %1562 = vmatprep.subr.mxu0 0.0
    %1563 = vmatpush1.msra.mxu0 0.0
    %1564 = vmatprep.subr.mxu0 0.0
    %1565 = vmatpush1.msra.mxu0 0.0
    %1566 = vmatprep.subr.mxu0 0.0
    %1567 = vmatpush1.msra.mxu0 0.0
    %1568 = vmatprep.subr.mxu0 0.0
    %1569 = vmatpush1.msra.mxu0 0.0
    %1570 = vmatprep.subr.mxu0 0.0
    %1571 = vmatpush1.msra.mxu0 0.0
    %1572 = vmatprep.subr.mxu0 0.0
    %1573 = vmatpush1.msra.mxu0 0.0
    %1574 = vmatprep.subr.mxu0 0.0
    %1575 = vmatpush1.msra.mxu0 0.0
    %1576 = vmatprep.subr.mxu0 0.0
    %1577 = vmatpush1.msra.mxu0 0.0
    %1578 = vmatprep.subr.mxu0 0.0
    %1579 = vmatpush1.msra.mxu0 0.0
    %1580 = vmatprep.subr.mxu0 0.0
    %1581 = vmatpush1.msra.mxu0 0.0
    %1582 = vmatprep.subr.mxu0 0.0
    %1583 = vmatpush1.msra.mxu0 0.0
    %1584 = vmatprep.subr.mxu0 0.0
    %1585 = vmatpush1.msra.mxu0 0.0
    %1586 = vmatprep.subr.mxu0 0.0
    %1587 = vmatpush1.msra.mxu0 0.0
    %1588 = vmatprep.subr.mxu0 0.0
    %1589 = vmatpush1.msra.mxu0 0.0
    %1590 = vmatprep.subr.mxu0 0.0
    %1591 = vmatpush1.msra.mxu0 0.0
    %1592 = vmatprep.subr.mxu0 0.0
    %1593 = vmatpush1.msra.mxu0 0.0
    %1594 = vmatprep.subr.mxu0 0.0
    %1595 = vmatpush1.msra.mxu0 0.0
    %1596 = vmatprep.subr.mxu0 0.0
    %1597 = vmatpush1.msra.mxu0 0.0
    %1598 = vmatprep.subr.mxu0 0.0
    %1599 = vmatpush1.msra.mxu0 0.0
    %1600 = vmatprep.subr.mxu0 0.0
    %1601 = vmatpush1.msra.mxu0 0.0
    %1602 = vmatprep.subr.mxu0 0.0
    %1603 = vmatpush1.msra.mxu0 0.0
    %1604 = vmatprep.subr.mxu0 0.0
    %1605 = vmatpush1.msra.mxu0 0.0
    %1606 = vmatprep.subr.mxu0 0.0
    %1607 = vmatpush1.msra.mxu0 0.0
    %1608 = vmatprep.subr.mxu0 0.0
    %1609 = vmatpush1.msra.mxu0 0.0
    %1610 = vmatprep.mubr.f32.mxu0 0.0
    %1611 = vmatmul.mubr.f32.gmra.mrb[0].mxu0 %v1544
    %v1612 = vpop.f32.mrb[0].mxu0
    %v1613 = vadd.f32 %v1540, %v1612
    %v1614 = vpop.f32.mrb[0].mxu0
    %1615 = vdwg.mxu0
    %1616 = vrot.lane.b32.xlu0 %v1197, 120
    %v1617 = vpop.permute.xlu0 %1616
    %1618 = vrot.lane.b32.xlu0 %v1269, 120
    %v1619 = vpop.permute.xlu0 %1618
    %1620 = vrot.lane.b32.xlu0 %v1274, 120
    %v1621 = vpop.permute.xlu0 %1620
    %v1622 = vsel %vm415, %v1617, 0
    %v1624 = vsel %vm415, %v1619, 0
    %v1626 = vsel %vm415, %v1621, 0
    %1628 = vmatprep.subr.mxu0 0.0
    %1629 = vmatpush1.xpose.msra.mxu0 %v1624
    %1630 = vmatprep.subr.mxu0 0.0
    %1631 = vmatpush1.xpose.msra.mxu0 %v1626
    %1632 = vmatprep.subr.mxu0 0.0
    %1633 = vmatpush1.xpose.msra.mxu0 0.0
    %1634 = vmatprep.subr.mxu0 0.0
    %1635 = vmatpush1.xpose.msra.mxu0 0.0
    %1636 = vmatprep.subr.mxu0 0.0
    %1637 = vmatpush1.xpose.msra.mxu0 0.0
    %1638 = vmatprep.subr.mxu0 0.0
    %1639 = vmatpush1.xpose.msra.mxu0 0.0
    %1640 = vmatprep.subr.mxu0 0.0
    %1641 = vmatpush1.xpose.msra.mxu0 0.0
    %1642 = vmatprep.subr.mxu0 0.0
    %1643 = vmatpush1.xpose.msra.mxu0 0.0
    %1644 = vmatprep.subr.mxu0 0.0
    %1645 = vmatpush1.xpose.msra.mxu0 0.0
    %1646 = vmatprep.subr.mxu0 0.0
    %1647 = vmatpush1.xpose.msra.mxu0 0.0
    %1648 = vmatprep.subr.mxu0 0.0
    %1649 = vmatpush1.xpose.msra.mxu0 0.0
    %1650 = vmatprep.subr.mxu0 0.0
    %1651 = vmatpush1.xpose.msra.mxu0 0.0
    %1652 = vmatprep.subr.mxu0 0.0
    %1653 = vmatpush1.xpose.msra.mxu0 0.0
    %1654 = vmatprep.subr.mxu0 0.0
    %1655 = vmatpush1.xpose.msra.mxu0 0.0
    %1656 = vmatprep.subr.mxu0 0.0
    %1657 = vmatpush1.xpose.msra.mxu0 0.0
    %1658 = vmatprep.subr.mxu0 0.0
    %1659 = vmatpush1.xpose.msra.mxu0 0.0
    %1660 = vmatprep.subr.mxu0 0.0
    %1661 = vmatpush1.xpose.msra.mxu0 0.0
    %1662 = vmatprep.subr.mxu0 0.0
    %1663 = vmatpush1.xpose.msra.mxu0 0.0
    %1664 = vmatprep.subr.mxu0 0.0
    %1665 = vmatpush1.xpose.msra.mxu0 0.0
    %1666 = vmatprep.subr.mxu0 0.0
    %1667 = vmatpush1.xpose.msra.mxu0 0.0
    %1668 = vmatprep.subr.mxu0 0.0
    %1669 = vmatpush1.xpose.msra.mxu0 0.0
    %1670 = vmatprep.subr.mxu0 0.0
    %1671 = vmatpush1.xpose.msra.mxu0 0.0
    %1672 = vmatprep.subr.mxu0 0.0
    %1673 = vmatpush1.xpose.msra.mxu0 0.0
    %1674 = vmatprep.subr.mxu0 0.0
    %1675 = vmatpush1.xpose.msra.mxu0 0.0
    %1676 = vmatprep.subr.mxu0 0.0
    %1677 = vmatpush1.xpose.msra.mxu0 0.0
    %1678 = vmatprep.subr.mxu0 0.0
    %1679 = vmatpush1.xpose.msra.mxu0 0.0
    %1680 = vmatprep.subr.mxu0 0.0
    %1681 = vmatpush1.xpose.msra.mxu0 0.0
    %1682 = vmatprep.subr.mxu0 0.0
    %1683 = vmatpush1.xpose.msra.mxu0 0.0
    %1684 = vmatprep.subr.mxu0 0.0
    %1685 = vmatpush1.xpose.msra.mxu0 0.0
    %1686 = vmatprep.subr.mxu0 0.0
    %1687 = vmatpush1.xpose.msra.mxu0 0.0
    %1688 = vmatprep.subr.mxu0 0.0
    %1689 = vmatpush1.xpose.msra.mxu0 0.0
    %1690 = vmatprep.subr.mxu0 0.0
    %1691 = vmatpush1.xpose.msra.mxu0 0.0
    %1692 = vmatprep.mubr.f32.mxu0 0.0
    %1693 = vmatmul.mubr.f32.gmra.mrb[0].mxu0 %v1622
    %v1694 = vpop.f32.mrb[0].mxu0
    %v1695 = vadd.f32 0.0, %v1694
    %v1696 = vpop.f32.mrb[0].mxu0
    %1697 = vdwg.mxu0
    %1699 = vrot.lane.b32.xlu0 %v1695, 120
    %v1700 = vpop.permute.xlu0 %1699
    %v1702 = vmax.f32 %v1695, %v1700
    %v1703 = vmax.f32 %v1702, 0.0
    %v1704 = vsub.f32 %v1695, %v1703
    %v1705 = vmul.f32 %v1704, 1.442695
    %v1706 = vpow.pop %v1705
    %1708 = vrot.lane.b32.xlu0 %v1703, 8
    %v1709 = vpop.permute.xlu0 %1708
    %v1711 = vsub.f32 %v1695, %v1709
    %v1712 = vmul.f32 %v1711, 1.442695
    %v1713 = vpow.pop %v1712
    %v1714 = vsub.f32 0.0, %v1703
    %v1715 = vmul.f32 %v1714, 1.442695
    %v1716 = vpow.pop %v1715
    %v1717 = vadd.f32 %v1716, %v1706
    %1719 = vrot.lane.b32.xlu0 %v1713, 120
    %v1720 = vpop.permute.xlu0 %1719
    %v1722 = vadd.f32 %v1717, %v1720
    %v1723 = vrcp.pop %v1722
    %v1724 = vmul.f32 %v85, %v1723
    %v1725 = vmul.f32 %v1706, %v1724
    %1727 = vrot.lane.b32.xlu0 %v1724, 8
    %v1728 = vpop.permute.xlu0 %1727
    %v1730 = vmul.f32 %v1713, %v1728
    %1732 = vrot.lane.b32.xlu0 %v1730, 120
    %v1733 = vpop.permute.xlu0 %1732
    %1735 = vrot.lane.b32.xlu0 %v1353, 120
    %v1736 = vpop.permute.xlu0 %1735
    %v1738 = vsel %vm415, %v1733, 0
    %1740 = vmatprep.subr.mxu0 0.0
    %1741 = vmatpush1.msra.mxu0 %v1736
    %1742 = vmatprep.subr.mxu0 0.0
    %1743 = vmatpush1.msra.mxu0 0.0
    %1744 = vmatprep.subr.mxu0 0.0
    %1745 = vmatpush1.msra.mxu0 0.0
    %1746 = vmatprep.subr.mxu0 0.0
    %1747 = vmatpush1.msra.mxu0 0.0
    %1748 = vmatprep.subr.mxu0 0.0
    %1749 = vmatpush1.msra.mxu0 0.0
    %1750 = vmatprep.subr.mxu0 0.0
    %1751 = vmatpush1.msra.mxu0 0.0
    %1752 = vmatprep.subr.mxu0 0.0
    %1753 = vmatpush1.msra.mxu0 0.0
    %1754 = vmatprep.subr.mxu0 0.0
    %1755 = vmatpush1.msra.mxu0 0.0
    %1756 = vmatprep.subr.mxu0 0.0
    %1757 = vmatpush1.msra.mxu0 0.0
    %1758 = vmatprep.subr.mxu0 0.0
    %1759 = vmatpush1.msra.mxu0 0.0
    %1760 = vmatprep.subr.mxu0 0.0
    %1761 = vmatpush1.msra.mxu0 0.0
    %1762 = vmatprep.subr.mxu0 0.0
    %1763 = vmatpush1.msra.mxu0 0.0
    %1764 = vmatprep.subr.mxu0 0.0
    %1765 = vmatpush1.msra.mxu0 0.0
    %1766 = vmatprep.subr.mxu0 0.0
    %1767 = vmatpush1.msra.mxu0 0.0
    %1768 = vmatprep.subr.mxu0 0.0
    %1769 = vmatpush1.msra.mxu0 0.0
    %1770 = vmatprep.subr.mxu0 0.0
    %1771 = vmatpush1.msra.mxu0 0.0
    %1772 = vmatprep.subr.mxu0 0.0
    %1773 = vmatpush1.msra.mxu0 0.0
    %1774 = vmatprep.subr.mxu0 0.0
    %1775 = vmatpush1.msra.mxu0 0.0
    %1776 = vmatprep.subr.mxu0 0.0
    %1777 = vmatpush1.msra.mxu0 0.0
    %1778 = vmatprep.subr.mxu0 0.0
    %1779 = vmatpush1.msra.mxu0 0.0
    %1780 = vmatprep.subr.mxu0 0.0
    %1781 = vmatpush1.msra.mxu0 0.0
    %1782 = vmatprep.subr.mxu0 0.0
    %1783 = vmatpush1.msra.mxu0 0.0
    %1784 = vmatprep.subr.mxu0 0.0
    %1785 = vmatpush1.msra.mxu0 0.0
    %1786 = vmatprep.subr.mxu0 0.0
    %1787 = vmatpush1.msra.mxu0 0.0
    %1788 = vmatprep.subr.mxu0 0.0
    %1789 = vmatpush1.msra.mxu0 0.0
    %1790 = vmatprep.subr.mxu0 0.0
    %1791 = vmatpush1.msra.mxu0 0.0
    %1792 = vmatprep.subr.mxu0 0.0
    %1793 = vmatpush1.msra.mxu0 0.0
    %1794 = vmatprep.subr.mxu0 0.0
    %1795 = vmatpush1.msra.mxu0 0.0
    %1796 = vmatprep.subr.mxu0 0.0
    %1797 = vmatpush1.msra.mxu0 0.0
    %1798 = vmatprep.subr.mxu0 0.0
    %1799 = vmatpush1.msra.mxu0 0.0
    %1800 = vmatprep.subr.mxu0 0.0
    %1801 = vmatpush1.msra.mxu0 0.0
    %1802 = vmatprep.subr.mxu0 0.0
    %1803 = vmatpush1.msra.mxu0 0.0
    %1804 = vmatprep.mubr.f32.mxu0 0.0
    %1805 = vmatmul.mubr.f32.gmra.mrb[0].mxu0 %v1738
    %v1806 = vpop.f32.mrb[0].mxu0
    %v1807 = vadd.f32 0.0, %v1806
    %v1808 = vpop.f32.mrb[0].mxu0
    %1809 = vdwg.mxu0
    %1811 = vrot.lane.b32.xlu0 %v1348, 120
    %v1812 = vpop.permute.xlu0 %1811
    %v1815 = vsel %vm415, %v1725, 0
    %1817 = vmatprep.subr.mxu0 0.0
    %1818 = vmatpush1.msra.mxu0 %v1812
    %1819 = vmatprep.subr.mxu0 0.0
    %1820 = vmatpush1.msra.mxu0 0.0
    %1821 = vmatprep.subr.mxu0 0.0
    %1822 = vmatpush1.msra.mxu0 0.0
    %1823 = vmatprep.subr.mxu0 0.0
    %1824 = vmatpush1.msra.mxu0 0.0
    %1825 = vmatprep.subr.mxu0 0.0
    %1826 = vmatpush1.msra.mxu0 0.0
    %1827 = vmatprep.subr.mxu0 0.0
    %1828 = vmatpush1.msra.mxu0 0.0
    %1829 = vmatprep.subr.mxu0 0.0
    %1830 = vmatpush1.msra.mxu0 0.0
    %1831 = vmatprep.subr.mxu0 0.0
    %1832 = vmatpush1.msra.mxu0 0.0
    %1833 = vmatprep.subr.mxu0 0.0
    %1834 = vmatpush1.msra.mxu0 0.0
    %1835 = vmatprep.subr.mxu0 0.0
    %1836 = vmatpush1.msra.mxu0 0.0
    %1837 = vmatprep.subr.mxu0 0.0
    %1838 = vmatpush1.msra.mxu0 0.0
    %1839 = vmatprep.subr.mxu0 0.0
    %1840 = vmatpush1.msra.mxu0 0.0
    %1841 = vmatprep.subr.mxu0 0.0
    %1842 = vmatpush1.msra.mxu0 0.0
    %1843 = vmatprep.subr.mxu0 0.0
    %1844 = vmatpush1.msra.mxu0 0.0
    %1845 = vmatprep.subr.mxu0 0.0
    %1846 = vmatpush1.msra.mxu0 0.0
    %1847 = vmatprep.subr.mxu0 0.0
    %1848 = vmatpush1.msra.mxu0 0.0
    %1849 = vmatprep.subr.mxu0 0.0
    %1850 = vmatpush1.msra.mxu0 0.0
    %1851 = vmatprep.subr.mxu0 0.0
    %1852 = vmatpush1.msra.mxu0 0.0
    %1853 = vmatprep.subr.mxu0 0.0
    %1854 = vmatpush1.msra.mxu0 0.0
    %1855 = vmatprep.subr.mxu0 0.0
    %1856 = vmatpush1.msra.mxu0 0.0
    %1857 = vmatprep.subr.mxu0 0.0
    %1858 = vmatpush1.msra.mxu0 0.0
    %1859 = vmatprep.subr.mxu0 0.0
    %1860 = vmatpush1.msra.mxu0 0.0
    %1861 = vmatprep.subr.mxu0 0.0
    %1862 = vmatpush1.msra.mxu0 0.0
    %1863 = vmatprep.subr.mxu0 0.0
    %1864 = vmatpush1.msra.mxu0 0.0
    %1865 = vmatprep.subr.mxu0 0.0
    %1866 = vmatpush1.msra.mxu0 0.0
    %1867 = vmatprep.subr.mxu0 0.0
    %1868 = vmatpush1.msra.mxu0 0.0
    %1869 = vmatprep.subr.mxu0 0.0
    %1870 = vmatpush1.msra.mxu0 0.0
    %1871 = vmatprep.subr.mxu0 0.0
    %1872 = vmatpush1.msra.mxu0 0.0
    %1873 = vmatprep.subr.mxu0 0.0
    %1874 = vmatpush1.msra.mxu0 0.0
    %1875 = vmatprep.subr.mxu0 0.0
    %1876 = vmatpush1.msra.mxu0 0.0
    %1877 = vmatprep.subr.mxu0 0.0
    %1878 = vmatpush1.msra.mxu0 0.0
    %1879 = vmatprep.subr.mxu0 0.0
    %1880 = vmatpush1.msra.mxu0 0.0
    %1881 = vmatprep.mubr.f32.mxu0 0.0
    %1882 = vmatmul.mubr.f32.gmra.mrb[0].mxu0 %v1815
    %v1883 = vpop.f32.mrb[0].mxu0
    %v1884 = vadd.f32 %v1807, %v1883
    %v1885 = vpop.f32.mrb[0].mxu0
    %1886 = vdwg.mxu0
    %1887 = vrot.lane.b32.xlu0 %v1197, 112
    %v1888 = vpop.permute.xlu0 %1887
    %1889 = vrot.lane.b32.xlu0 %v1269, 112
    %v1890 = vpop.permute.xlu0 %1889
    %1891 = vrot.lane.b32.xlu0 %v1274, 112
    %v1892 = vpop.permute.xlu0 %1891
    %v1893 = vsel %vm415, %v1888, 0
    %v1895 = vsel %vm415, %v1890, 0
    %v1897 = vsel %vm415, %v1892, 0
    %1899 = vmatprep.subr.mxu0 0.0
    %1900 = vmatpush1.xpose.msra.mxu0 %v1895
    %1901 = vmatprep.subr.mxu0 0.0
    %1902 = vmatpush1.xpose.msra.mxu0 %v1897
    %1903 = vmatprep.subr.mxu0 0.0
    %1904 = vmatpush1.xpose.msra.mxu0 0.0
    %1905 = vmatprep.subr.mxu0 0.0
    %1906 = vmatpush1.xpose.msra.mxu0 0.0
    %1907 = vmatprep.subr.mxu0 0.0
    %1908 = vmatpush1.xpose.msra.mxu0 0.0
    %1909 = vmatprep.subr.mxu0 0.0
    %1910 = vmatpush1.xpose.msra.mxu0 0.0
    %1911 = vmatprep.subr.mxu0 0.0
    %1912 = vmatpush1.xpose.msra.mxu0 0.0
    %1913 = vmatprep.subr.mxu0 0.0
    %1914 = vmatpush1.xpose.msra.mxu0 0.0
    %1915 = vmatprep.subr.mxu0 0.0
    %1916 = vmatpush1.xpose.msra.mxu0 0.0
    %1917 = vmatprep.subr.mxu0 0.0
    %1918 = vmatpush1.xpose.msra.mxu0 0.0
    %1919 = vmatprep.subr.mxu0 0.0
    %1920 = vmatpush1.xpose.msra.mxu0 0.0
    %1921 = vmatprep.subr.mxu0 0.0
    %1922 = vmatpush1.xpose.msra.mxu0 0.0
    %1923 = vmatprep.subr.mxu0 0.0
    %1924 = vmatpush1.xpose.msra.mxu0 0.0
    %1925 = vmatprep.subr.mxu0 0.0
    %1926 = vmatpush1.xpose.msra.mxu0 0.0
    %1927 = vmatprep.subr.mxu0 0.0
    %1928 = vmatpush1.xpose.msra.mxu0 0.0
    %1929 = vmatprep.subr.mxu0 0.0
    %1930 = vmatpush1.xpose.msra.mxu0 0.0
    %1931 = vmatprep.subr.mxu0 0.0
    %1932 = vmatpush1.xpose.msra.mxu0 0.0
    %1933 = vmatprep.subr.mxu0 0.0
    %1934 = vmatpush1.xpose.msra.mxu0 0.0
    %1935 = vmatprep.subr.mxu0 0.0
    %1936 = vmatpush1.xpose.msra.mxu0 0.0
    %1937 = vmatprep.subr.mxu0 0.0
    %1938 = vmatpush1.xpose.msra.mxu0 0.0
    %1939 = vmatprep.subr.mxu0 0.0
    %1940 = vmatpush1.xpose.msra.mxu0 0.0
    %1941 = vmatprep.subr.mxu0 0.0
    %1942 = vmatpush1.xpose.msra.mxu0 0.0
    %1943 = vmatprep.subr.mxu0 0.0
    %1944 = vmatpush1.xpose.msra.mxu0 0.0
    %1945 = vmatprep.subr.mxu0 0.0
    %1946 = vmatpush1.xpose.msra.mxu0 0.0
    %1947 = vmatprep.subr.mxu0 0.0
    %1948 = vmatpush1.xpose.msra.mxu0 0.0
    %1949 = vmatprep.subr.mxu0 0.0
    %1950 = vmatpush1.xpose.msra.mxu0 0.0
    %1951 = vmatprep.subr.mxu0 0.0
    %1952 = vmatpush1.xpose.msra.mxu0 0.0
    %1953 = vmatprep.subr.mxu0 0.0
    %1954 = vmatpush1.xpose.msra.mxu0 0.0
    %1955 = vmatprep.subr.mxu0 0.0
    %1956 = vmatpush1.xpose.msra.mxu0 0.0
    %1957 = vmatprep.subr.mxu0 0.0
    %1958 = vmatpush1.xpose.msra.mxu0 0.0
    %1959 = vmatprep.subr.mxu0 0.0
    %1960 = vmatpush1.xpose.msra.mxu0 0.0
    %1961 = vmatprep.subr.mxu0 0.0
    %1962 = vmatpush1.xpose.msra.mxu0 0.0
    %1963 = vmatprep.mubr.f32.mxu0 0.0
    %1964 = vmatmul.mubr.f32.gmra.mrb[0].mxu0 %v1893
    %v1965 = vpop.f32.mrb[0].mxu0
    %v1966 = vadd.f32 0.0, %v1965
    %v1967 = vpop.f32.mrb[0].mxu0
    %1968 = vdwg.mxu0
    %1970 = vrot.lane.b32.xlu0 %v1966, 120
    %v1971 = vpop.permute.xlu0 %1970
    %v1973 = vmax.f32 %v1966, %v1971
    %v1974 = vmax.f32 %v1973, 0.0
    %v1975 = vsub.f32 %v1966, %v1974
    %v1976 = vmul.f32 %v1975, 1.442695
    %v1977 = vpow.pop %v1976
    %1979 = vrot.lane.b32.xlu0 %v1974, 8
    %v1980 = vpop.permute.xlu0 %1979
    %v1982 = vsub.f32 %v1966, %v1980
    %v1983 = vmul.f32 %v1982, 1.442695
    %v1984 = vpow.pop %v1983
    %v1985 = vsub.f32 0.0, %v1974
    %v1986 = vmul.f32 %v1985, 1.442695
    %v1987 = vpow.pop %v1986
    %v1988 = vadd.f32 %v1987, %v1977
    %1990 = vrot.lane.b32.xlu0 %v1984, 120
    %v1991 = vpop.permute.xlu0 %1990
    %v1993 = vadd.f32 %v1988, %v1991
    %v1994 = vrcp.pop %v1993
    %v1995 = vmul.f32 %v85, %v1994
    %v1996 = vmul.f32 %v1977, %v1995
    %1998 = vrot.lane.b32.xlu0 %v1995, 8
    %v1999 = vpop.permute.xlu0 %1998
    %v2001 = vmul.f32 %v1984, %v1999
    %2003 = vrot.lane.b32.xlu0 %v2001, 120
    %v2004 = vpop.permute.xlu0 %2003
    %2005 = vrot.lane.b32.xlu0 %v1353, 112
    %v2006 = vpop.permute.xlu0 %2005
    %v2008 = vsel %vm415, %v2004, 0
    %2010 = vmatprep.subr.mxu0 0.0
    %2011 = vmatpush1.msra.mxu0 %v2006
    %2012 = vmatprep.subr.mxu0 0.0
    %2013 = vmatpush1.msra.mxu0 0.0
    %2014 = vmatprep.subr.mxu0 0.0
    %2015 = vmatpush1.msra.mxu0 0.0
    %2016 = vmatprep.subr.mxu0 0.0
    %2017 = vmatpush1.msra.mxu0 0.0
    %2018 = vmatprep.subr.mxu0 0.0
    %2019 = vmatpush1.msra.mxu0 0.0
    %2020 = vmatprep.subr.mxu0 0.0
    %2021 = vmatpush1.msra.mxu0 0.0
    %2022 = vmatprep.subr.mxu0 0.0
    %2023 = vmatpush1.msra.mxu0 0.0
    %2024 = vmatprep.subr.mxu0 0.0
    %2025 = vmatpush1.msra.mxu0 0.0
    %2026 = vmatprep.subr.mxu0 0.0
    %2027 = vmatpush1.msra.mxu0 0.0
    %2028 = vmatprep.subr.mxu0 0.0
    %2029 = vmatpush1.msra.mxu0 0.0
    %2030 = vmatprep.subr.mxu0 0.0
    %2031 = vmatpush1.msra.mxu0 0.0
    %2032 = vmatprep.subr.mxu0 0.0
    %2033 = vmatpush1.msra.mxu0 0.0
    %2034 = vmatprep.subr.mxu0 0.0
    %2035 = vmatpush1.msra.mxu0 0.0
    %2036 = vmatprep.subr.mxu0 0.0
    %2037 = vmatpush1.msra.mxu0 0.0
    %2038 = vmatprep.subr.mxu0 0.0
    %2039 = vmatpush1.msra.mxu0 0.0
    %2040 = vmatprep.subr.mxu0 0.0
    %2041 = vmatpush1.msra.mxu0 0.0
    %2042 = vmatprep.subr.mxu0 0.0
    %2043 = vmatpush1.msra.mxu0 0.0
    %2044 = vmatprep.subr.mxu0 0.0
    %2045 = vmatpush1.msra.mxu0 0.0
    %2046 = vmatprep.subr.mxu0 0.0
    %2047 = vmatpush1.msra.mxu0 0.0
    %2048 = vmatprep.subr.mxu0 0.0
    %2049 = vmatpush1.msra.mxu0 0.0
    %2050 = vmatprep.subr.mxu0 0.0
    %2051 = vmatpush1.msra.mxu0 0.0
    %2052 = vmatprep.subr.mxu0 0.0
    %2053 = vmatpush1.msra.mxu0 0.0
    %2054 = vmatprep.subr.mxu0 0.0
    %2055 = vmatpush1.msra.mxu0 0.0
    %2056 = vmatprep.subr.mxu0 0.0
    %2057 = vmatpush1.msra.mxu0 0.0
    %2058 = vmatprep.subr.mxu0 0.0
    %2059 = vmatpush1.msra.mxu0 0.0
    %2060 = vmatprep.subr.mxu0 0.0
    %2061 = vmatpush1.msra.mxu0 0.0
    %2062 = vmatprep.subr.mxu0 0.0
    %2063 = vmatpush1.msra.mxu0 0.0
    %2064 = vmatprep.subr.mxu0 0.0
    %2065 = vmatpush1.msra.mxu0 0.0
    %2066 = vmatprep.subr.mxu0 0.0
    %2067 = vmatpush1.msra.mxu0 0.0
    %2068 = vmatprep.subr.mxu0 0.0
    %2069 = vmatpush1.msra.mxu0 0.0
    %2070 = vmatprep.subr.mxu0 0.0
    %2071 = vmatpush1.msra.mxu0 0.0
    %2072 = vmatprep.subr.mxu0 0.0
    %2073 = vmatpush1.msra.mxu0 0.0
    %2074 = vmatprep.mubr.f32.mxu0 0.0
    %2075 = vmatmul.mubr.f32.gmra.mrb[0].mxu0 %v2008
    %v2076 = vpop.f32.mrb[0].mxu0
    %v2077 = vadd.f32 0.0, %v2076
    %v2078 = vpop.f32.mrb[0].mxu0
    %2079 = vdwg.mxu0
    %2080 = vrot.lane.b32.xlu0 %v1348, 112
    %v2081 = vpop.permute.xlu0 %2080
    %v2084 = vsel %vm415, %v1996, 0
    %2086 = vmatprep.subr.mxu0 0.0
    %2087 = vmatpush1.msra.mxu0 %v2081
    %2088 = vmatprep.subr.mxu0 0.0
    %2089 = vmatpush1.msra.mxu0 0.0
    %2090 = vmatprep.subr.mxu0 0.0
    %2091 = vmatpush1.msra.mxu0 0.0
    %2092 = vmatprep.subr.mxu0 0.0
    %2093 = vmatpush1.msra.mxu0 0.0
    %2094 = vmatprep.subr.mxu0 0.0
    %2095 = vmatpush1.msra.mxu0 0.0
    %2096 = vmatprep.subr.mxu0 0.0
    %2097 = vmatpush1.msra.mxu0 0.0
    %2098 = vmatprep.subr.mxu0 0.0
    %2099 = vmatpush1.msra.mxu0 0.0
    %2100 = vmatprep.subr.mxu0 0.0
    %2101 = vmatpush1.msra.mxu0 0.0
    %2102 = vmatprep.subr.mxu0 0.0
    %2103 = vmatpush1.msra.mxu0 0.0
    %2104 = vmatprep.subr.mxu0 0.0
    %2105 = vmatpush1.msra.mxu0 0.0
    %2106 = vmatprep.subr.mxu0 0.0
    %2107 = vmatpush1.msra.mxu0 0.0
    %2108 = vmatprep.subr.mxu0 0.0
    %2109 = vmatpush1.msra.mxu0 0.0
    %2110 = vmatprep.subr.mxu0 0.0
    %2111 = vmatpush1.msra.mxu0 0.0
    %2112 = vmatprep.subr.mxu0 0.0
    %2113 = vmatpush1.msra.mxu0 0.0
    %2114 = vmatprep.subr.mxu0 0.0
    %2115 = vmatpush1.msra.mxu0 0.0
    %2116 = vmatprep.subr.mxu0 0.0
    %2117 = vmatpush1.msra.mxu0 0.0
    %2118 = vmatprep.subr.mxu0 0.0
    %2119 = vmatpush1.msra.mxu0 0.0
    %2120 = vmatprep.subr.mxu0 0.0
    %2121 = vmatpush1.msra.mxu0 0.0
    %2122 = vmatprep.subr.mxu0 0.0
    %2123 = vmatpush1.msra.mxu0 0.0
    %2124 = vmatprep.subr.mxu0 0.0
    %2125 = vmatpush1.msra.mxu0 0.0
    %2126 = vmatprep.subr.mxu0 0.0
    %2127 = vmatpush1.msra.mxu0 0.0
    %2128 = vmatprep.subr.mxu0 0.0
    %2129 = vmatpush1.msra.mxu0 0.0
    %2130 = vmatprep.subr.mxu0 0.0
    %2131 = vmatpush1.msra.mxu0 0.0
    %2132 = vmatprep.subr.mxu0 0.0
    %2133 = vmatpush1.msra.mxu0 0.0
    %2134 = vmatprep.subr.mxu0 0.0
    %2135 = vmatpush1.msra.mxu0 0.0
    %2136 = vmatprep.subr.mxu0 0.0
    %2137 = vmatpush1.msra.mxu0 0.0
    %2138 = vmatprep.subr.mxu0 0.0
    %2139 = vmatpush1.msra.mxu0 0.0
    %2140 = vmatprep.subr.mxu0 0.0
    %2141 = vmatpush1.msra.mxu0 0.0
    %2142 = vmatprep.subr.mxu0 0.0
    %2143 = vmatpush1.msra.mxu0 0.0
    %2144 = vmatprep.subr.mxu0 0.0
    %2145 = vmatpush1.msra.mxu0 0.0
    %2146 = vmatprep.subr.mxu0 0.0
    %2147 = vmatpush1.msra.mxu0 0.0
    %2148 = vmatprep.subr.mxu0 0.0
    %2149 = vmatpush1.msra.mxu0 0.0
    %2150 = vmatprep.mubr.f32.mxu0 0.0
    %2151 = vmatmul.mubr.f32.gmra.mrb[0].mxu0 %v2084
    %v2152 = vpop.f32.mrb[0].mxu0
    %v2153 = vadd.f32 %v2077, %v2152
    %v2154 = vpop.f32.mrb[0].mxu0
    %2155 = vdwg.mxu0
    %2156 = vrot.lane.b32.xlu0 %v1197, 104
    %v2157 = vpop.permute.xlu0 %2156
    %2158 = vrot.lane.b32.xlu0 %v1269, 104
    %v2159 = vpop.permute.xlu0 %2158
    %2160 = vrot.lane.b32.xlu0 %v1274, 104
    %v2161 = vpop.permute.xlu0 %2160
    %v2162 = vsel %vm415, %v2157, 0
    %v2164 = vsel %vm415, %v2159, 0
    %v2166 = vsel %vm415, %v2161, 0
    %2168 = vmatprep.subr.mxu0 0.0
    %2169 = vmatpush1.xpose.msra.mxu0 %v2164
    %2170 = vmatprep.subr.mxu0 0.0
    %2171 = vmatpush1.xpose.msra.mxu0 %v2166
    %2172 = vmatprep.subr.mxu0 0.0
    %2173 = vmatpush1.xpose.msra.mxu0 0.0
    %2174 = vmatprep.subr.mxu0 0.0
    %2175 = vmatpush1.xpose.msra.mxu0 0.0
    %2176 = vmatprep.subr.mxu0 0.0
    %2177 = vmatpush1.xpose.msra.mxu0 0.0
    %2178 = vmatprep.subr.mxu0 0.0
    %2179 = vmatpush1.xpose.msra.mxu0 0.0
    %2180 = vmatprep.subr.mxu0 0.0
    %2181 = vmatpush1.xpose.msra.mxu0 0.0
    %2182 = vmatprep.subr.mxu0 0.0
    %2183 = vmatpush1.xpose.msra.mxu0 0.0
    %2184 = vmatprep.subr.mxu0 0.0
    %2185 = vmatpush1.xpose.msra.mxu0 0.0
    %2186 = vmatprep.subr.mxu0 0.0
    %2187 = vmatpush1.xpose.msra.mxu0 0.0
    %2188 = vmatprep.subr.mxu0 0.0
    %2189 = vmatpush1.xpose.msra.mxu0 0.0
    %2190 = vmatprep.subr.mxu0 0.0
    %2191 = vmatpush1.xpose.msra.mxu0 0.0
    %2192 = vmatprep.subr.mxu0 0.0
    %2193 = vmatpush1.xpose.msra.mxu0 0.0
    %2194 = vmatprep.subr.mxu0 0.0
    %2195 = vmatpush1.xpose.msra.mxu0 0.0
    %2196 = vmatprep.subr.mxu0 0.0
    %2197 = vmatpush1.xpose.msra.mxu0 0.0
    %2198 = vmatprep.subr.mxu0 0.0
    %2199 = vmatpush1.xpose.msra.mxu0 0.0
    %2200 = vmatprep.subr.mxu0 0.0
    %2201 = vmatpush1.xpose.msra.mxu0 0.0
    %2202 = vmatprep.subr.mxu0 0.0
    %2203 = vmatpush1.xpose.msra.mxu0 0.0
    %2204 = vmatprep.subr.mxu0 0.0
    %2205 = vmatpush1.xpose.msra.mxu0 0.0
    %2206 = vmatprep.subr.mxu0 0.0
    %2207 = vmatpush1.xpose.msra.mxu0 0.0
    %2208 = vmatprep.subr.mxu0 0.0
    %2209 = vmatpush1.xpose.msra.mxu0 0.0
    %2210 = vmatprep.subr.mxu0 0.0
    %2211 = vmatpush1.xpose.msra.mxu0 0.0
    %2212 = vmatprep.subr.mxu0 0.0
    %2213 = vmatpush1.xpose.msra.mxu0 0.0
    %2214 = vmatprep.subr.mxu0 0.0
    %2215 = vmatpush1.xpose.msra.mxu0 0.0
    %2216 = vmatprep.subr.mxu0 0.0
    %2217 = vmatpush1.xpose.msra.mxu0 0.0
    %2218 = vmatprep.subr.mxu0 0.0
    %2219 = vmatpush1.xpose.msra.mxu0 0.0
    %2220 = vmatprep.subr.mxu0 0.0
    %2221 = vmatpush1.xpose.msra.mxu0 0.0
    %2222 = vmatprep.subr.mxu0 0.0
    %2223 = vmatpush1.xpose.msra.mxu0 0.0
    %2224 = vmatprep.subr.mxu0 0.0
    %2225 = vmatpush1.xpose.msra.mxu0 0.0
    %2226 = vmatprep.subr.mxu0 0.0
    %2227 = vmatpush1.xpose.msra.mxu0 0.0
    %2228 = vmatprep.subr.mxu0 0.0
    %2229 = vmatpush1.xpose.msra.mxu0 0.0
    %2230 = vmatprep.subr.mxu0 0.0
    %2231 = vmatpush1.xpose.msra.mxu0 0.0
    %2232 = vmatprep.mubr.f32.mxu0 0.0
    %2233 = vmatmul.mubr.f32.gmra.mrb[0].mxu0 %v2162
    %v2234 = vpop.f32.mrb[0].mxu0
    %v2235 = vadd.f32 0.0, %v2234
    %v2236 = vpop.f32.mrb[0].mxu0
    %2237 = vdwg.mxu0
    %2239 = vrot.lane.b32.xlu0 %v2235, 120
    %v2240 = vpop.permute.xlu0 %2239
    %v2242 = vmax.f32 %v2235, %v2240
    %v2243 = vmax.f32 %v2242, 0.0
    %v2244 = vsub.f32 %v2235, %v2243
    %v2245 = vmul.f32 %v2244, 1.442695
    %v2246 = vpow.pop %v2245
    %2248 = vrot.lane.b32.xlu0 %v2243, 8
    %v2249 = vpop.permute.xlu0 %2248
    %v2251 = vsub.f32 %v2235, %v2249
    %v2252 = vmul.f32 %v2251, 1.442695
    %v2253 = vpow.pop %v2252
    %v2254 = vsub.f32 0.0, %v2243
    %v2255 = vmul.f32 %v2254, 1.442695
    %v2256 = vpow.pop %v2255
    %v2257 = vadd.f32 %v2256, %v2246
    %2259 = vrot.lane.b32.xlu0 %v2253, 120
    %v2260 = vpop.permute.xlu0 %2259
    %v2262 = vadd.f32 %v2257, %v2260
    %v2263 = vrcp.pop %v2262
    %v2264 = vmul.f32 %v85, %v2263
    %v2265 = vmul.f32 %v2246, %v2264
    %2267 = vrot.lane.b32.xlu0 %v2264, 8
    %v2268 = vpop.permute.xlu0 %2267
    %v2270 = vmul.f32 %v2253, %v2268
    %2272 = vrot.lane.b32.xlu0 %v2270, 120
    %v2273 = vpop.permute.xlu0 %2272
    %2274 = vrot.lane.b32.xlu0 %v1353, 104
    %v2275 = vpop.permute.xlu0 %2274
    %v2277 = vsel %vm415, %v2273, 0
    %2279 = vmatprep.subr.mxu0 0.0
    %2280 = vmatpush1.msra.mxu0 %v2275
    %2281 = vmatprep.subr.mxu0 0.0
    %2282 = vmatpush1.msra.mxu0 0.0
    %2283 = vmatprep.subr.mxu0 0.0
    %2284 = vmatpush1.msra.mxu0 0.0
    %2285 = vmatprep.subr.mxu0 0.0
    %2286 = vmatpush1.msra.mxu0 0.0
    %2287 = vmatprep.subr.mxu0 0.0
    %2288 = vmatpush1.msra.mxu0 0.0
    %2289 = vmatprep.subr.mxu0 0.0
    %2290 = vmatpush1.msra.mxu0 0.0
    %2291 = vmatprep.subr.mxu0 0.0
    %2292 = vmatpush1.msra.mxu0 0.0
    %2293 = vmatprep.subr.mxu0 0.0
    %2294 = vmatpush1.msra.mxu0 0.0
    %2295 = vmatprep.subr.mxu0 0.0
    %2296 = vmatpush1.msra.mxu0 0.0
    %2297 = vmatprep.subr.mxu0 0.0
    %2298 = vmatpush1.msra.mxu0 0.0
    %2299 = vmatprep.subr.mxu0 0.0
    %2300 = vmatpush1.msra.mxu0 0.0
    %2301 = vmatprep.subr.mxu0 0.0
    %2302 = vmatpush1.msra.mxu0 0.0
    %2303 = vmatprep.subr.mxu0 0.0
    %2304 = vmatpush1.msra.mxu0 0.0
    %2305 = vmatprep.subr.mxu0 0.0
    %2306 = vmatpush1.msra.mxu0 0.0
    %2307 = vmatprep.subr.mxu0 0.0
    %2308 = vmatpush1.msra.mxu0 0.0
    %2309 = vmatprep.subr.mxu0 0.0
    %2310 = vmatpush1.msra.mxu0 0.0
    %2311 = vmatprep.subr.mxu0 0.0
    %2312 = vmatpush1.msra.mxu0 0.0
    %2313 = vmatprep.subr.mxu0 0.0
    %2314 = vmatpush1.msra.mxu0 0.0
    %2315 = vmatprep.subr.mxu0 0.0
    %2316 = vmatpush1.msra.mxu0 0.0
    %2317 = vmatprep.subr.mxu0 0.0
    %2318 = vmatpush1.msra.mxu0 0.0
    %2319 = vmatprep.subr.mxu0 0.0
    %2320 = vmatpush1.msra.mxu0 0.0
    %2321 = vmatprep.subr.mxu0 0.0
    %2322 = vmatpush1.msra.mxu0 0.0
    %2323 = vmatprep.subr.mxu0 0.0
    %2324 = vmatpush1.msra.mxu0 0.0
    %2325 = vmatprep.subr.mxu0 0.0
    %2326 = vmatpush1.msra.mxu0 0.0
    %2327 = vmatprep.subr.mxu0 0.0
    %2328 = vmatpush1.msra.mxu0 0.0
    %2329 = vmatprep.subr.mxu0 0.0
    %2330 = vmatpush1.msra.mxu0 0.0
    %2331 = vmatprep.subr.mxu0 0.0
    %2332 = vmatpush1.msra.mxu0 0.0
    %2333 = vmatprep.subr.mxu0 0.0
    %2334 = vmatpush1.msra.mxu0 0.0
    %2335 = vmatprep.subr.mxu0 0.0
    %2336 = vmatpush1.msra.mxu0 0.0
    %2337 = vmatprep.subr.mxu0 0.0
    %2338 = vmatpush1.msra.mxu0 0.0
    %2339 = vmatprep.subr.mxu0 0.0
    %2340 = vmatpush1.msra.mxu0 0.0
    %2341 = vmatprep.subr.mxu0 0.0
    %2342 = vmatpush1.msra.mxu0 0.0
    %2343 = vmatprep.mubr.f32.mxu0 0.0
    %2344 = vmatmul.mubr.f32.gmra.mrb[0].mxu0 %v2277
    %v2345 = vpop.f32.mrb[0].mxu0
    %v2346 = vadd.f32 0.0, %v2345
    %v2347 = vpop.f32.mrb[0].mxu0
    %2348 = vdwg.mxu0
    %2349 = vrot.lane.b32.xlu0 %v1348, 104
    %v2350 = vpop.permute.xlu0 %2349
    %v2353 = vsel %vm415, %v2265, 0
    %2355 = vmatprep.subr.mxu0 0.0
    %2356 = vmatpush1.msra.mxu0 %v2350
    %2357 = vmatprep.subr.mxu0 0.0
    %2358 = vmatpush1.msra.mxu0 0.0
    %2359 = vmatprep.subr.mxu0 0.0
    %2360 = vmatpush1.msra.mxu0 0.0
    %2361 = vmatprep.subr.mxu0 0.0
    %2362 = vmatpush1.msra.mxu0 0.0
    %2363 = vmatprep.subr.mxu0 0.0
    %2364 = vmatpush1.msra.mxu0 0.0
    %2365 = vmatprep.subr.mxu0 0.0
    %2366 = vmatpush1.msra.mxu0 0.0
    %2367 = vmatprep.subr.mxu0 0.0
    %2368 = vmatpush1.msra.mxu0 0.0
    %2369 = vmatprep.subr.mxu0 0.0
    %2370 = vmatpush1.msra.mxu0 0.0
    %2371 = vmatprep.subr.mxu0 0.0
    %2372 = vmatpush1.msra.mxu0 0.0
    %2373 = vmatprep.subr.mxu0 0.0
    %2374 = vmatpush1.msra.mxu0 0.0
    %2375 = vmatprep.subr.mxu0 0.0
    %2376 = vmatpush1.msra.mxu0 0.0
    %2377 = vmatprep.subr.mxu0 0.0
    %2378 = vmatpush1.msra.mxu0 0.0
    %2379 = vmatprep.subr.mxu0 0.0
    %2380 = vmatpush1.msra.mxu0 0.0
    %2381 = vmatprep.subr.mxu0 0.0
    %2382 = vmatpush1.msra.mxu0 0.0
    %2383 = vmatprep.subr.mxu0 0.0
    %2384 = vmatpush1.msra.mxu0 0.0
    %2385 = vmatprep.subr.mxu0 0.0
    %2386 = vmatpush1.msra.mxu0 0.0
    %2387 = vmatprep.subr.mxu0 0.0
    %2388 = vmatpush1.msra.mxu0 0.0
    %2389 = vmatprep.subr.mxu0 0.0
    %2390 = vmatpush1.msra.mxu0 0.0
    %2391 = vmatprep.subr.mxu0 0.0
    %2392 = vmatpush1.msra.mxu0 0.0
    %2393 = vmatprep.subr.mxu0 0.0
    %2394 = vmatpush1.msra.mxu0 0.0
    %2395 = vmatprep.subr.mxu0 0.0
    %2396 = vmatpush1.msra.mxu0 0.0
    %2397 = vmatprep.subr.mxu0 0.0
    %2398 = vmatpush1.msra.mxu0 0.0
    %2399 = vmatprep.subr.mxu0 0.0
    %2400 = vmatpush1.msra.mxu0 0.0
    %2401 = vmatprep.subr.mxu0 0.0
    %2402 = vmatpush1.msra.mxu0 0.0
    %2403 = vmatprep.subr.mxu0 0.0
    %2404 = vmatpush1.msra.mxu0 0.0
    %2405 = vmatprep.subr.mxu0 0.0
    %2406 = vmatpush1.msra.mxu0 0.0
    %2407 = vmatprep.subr.mxu0 0.0
    %2408 = vmatpush1.msra.mxu0 0.0
    %2409 = vmatprep.subr.mxu0 0.0
    %2410 = vmatpush1.msra.mxu0 0.0
    %2411 = vmatprep.subr.mxu0 0.0
    %2412 = vmatpush1.msra.mxu0 0.0
    %2413 = vmatprep.subr.mxu0 0.0
    %2414 = vmatpush1.msra.mxu0 0.0
    %2415 = vmatprep.subr.mxu0 0.0
    %2416 = vmatpush1.msra.mxu0 0.0
    %2417 = vmatprep.subr.mxu0 0.0
    %2418 = vmatpush1.msra.mxu0 0.0
    %2419 = vmatprep.mubr.f32.mxu0 0.0
    %2420 = vmatmul.mubr.f32.gmra.mrb[0].mxu0 %v2353
    %v2421 = vpop.f32.mrb[0].mxu0
    %v2422 = vadd.f32 %v2346, %v2421
    %v2423 = vpop.f32.mrb[0].mxu0
    %2424 = vdwg.mxu0
    %2426 = vrot.lane.b32.xlu0 %v1884, 8
    %v2427 = vpop.permute.xlu0 %2426
    %2430 = vrot.lane.b32.xlu0 %v2153, 16
    %v2431 = vpop.permute.xlu0 %2430
    %2434 = vrot.lane.b32.xlu0 %v2422, 24
    %v2435 = vpop.permute.xlu0 %2434
    %v2437 = vsel %vm415, %v1613, %v2427
    %v2438 = vsel %vm94, %v2437, %v2431
    %v2439 = vsel %vm1086, %v2438, %v2435
    %v2440 = vmax.f32 %v2439, 0.0
    %v2441 = vlaneseq
    %v2442 = vshrl.u32 %v2441, 7
    %v2443 = vsub.s32 0, %v2442
    %v2444 = vrot.slane %v1118, %v2443
    %v2445 = vmul.f32 %v2440, %v2444
    %v2446 = vlaneseq
    %v2447 = vshrl.u32 %v2446, 7
    %v2448 = vsub.s32 0, %v2447
    %v2449 = vrot.slane %v1119, %v2448
    %v2450 = vadd.f32 %v2445, %v2449
    %s2451 = scalar_lea.vmem [#allocation11], 8
    %2452 = vst.msk [vmem:[%s2451] sm:$0xff] %vm192, %v2450
    // Predicated region
    $region42: #{tpu_custom_call.1} parent=1 // pred_check
      _
    $region43: #{tpu_custom_call.1} parent=1 // pred_check_branch
      %2454 = sbr.rel (0) target = $region45
    $region44: #{tpu_custom_call.1} parent=1 // pred_region
      %s2456 = ssub.s32 256, 256
      %2457 = vsyncadd [#allocation4], %s2456
      %s2458 = sshll.u32 [#allocation11], 4
      %s2459 = int_to_ptr.vmem [resolvable:$true] %s2458
      %2464 = dma.vmem_to_hbm [thread:$0]  %s2459, 256, %s5, [#allocation4], 128, 128, 8
    $region45: #{tpu_custom_call.1} parent=1 // pred_fallthru
      _
    // Predicated region
    $region46: #{tpu_custom_call.1} parent=1 // pred_check
      _
    $region47: #{tpu_custom_call.1} parent=1 // pred_check_branch
      %2466 = sbr.rel (0) target = $region49
    $region48: #{tpu_custom_call.1} parent=1 // pred_region
      %2467 = dma.done [#allocation4], 256
    $region49: #{tpu_custom_call.1} parent=1 // pred_fallthru
      _
    %2468 = vsyncpa [#allocation3], 1
    %2469 = vsyncpa [#allocation6], 1
    %2470 = vsyncpa [#allocation9], 1
    %2471 = vsyncpa [#allocation4], 1

</llo_original>
